<compile_context>
chip_gen: v7x
topology: tpu7x:2x2x1
jax: 0.10.0
libtpu: 0.0.40
codegen_flags: <defaults>
</compile_context>

<pallas_src>
import functools

import jax
import jax.numpy as jnp
import numpy as np
from jax.experimental import pallas as pl
from jax.experimental.pallas import tpu as pltpu

_BIG_AREA = 99999999.0
_FPB = 7          # packed f32 fields per gt box: x0, y0, x1, y1, cls, cx, cy
_MPT = 8          # packed f32 metadata per tile: stride, half, radiu, lmin, lmax, 1/w, w, base
_SUB = 8          # sublane rows per location tile
_MIN_TILE = _SUB * 128


def _cdiv(a, b):
    return -(-a // b)


# ----------------------------------------------------------------------------
# helper (used only by the pure-JAX reference): fmap coords -> image coords
# ----------------------------------------------------------------------------
def coords_fmap2orig(h, w, stride):
    shifts_x = jnp.arange(0, w * stride, stride, dtype=jnp.float32)
    shifts_y = jnp.arange(0, h * stride, stride, dtype=jnp.float32)
    shift_y, shift_x = jnp.meshgrid(shifts_y, shifts_x, indexing="ij")
    coords = jnp.stack([shift_x.reshape(-1), shift_y.reshape(-1)], axis=-1)
    return coords + stride // 2  # [N, 2] float32


# ----------------------------------------------------------------------------
# Pallas kernel: one (batch, location-tile) per grid step, all levels fused
# ----------------------------------------------------------------------------
def _gen_targets_kernel(box_ref, meta_ref, out_ref, *, m, lanes):
    b = pl.program_id(0)
    t = pl.program_id(1)

    # ---- per-tile metadata (SMEM scalars) ----
    mo = t * _MPT
    stride = meta_ref[mo + 0]
    half = meta_ref[mo + 1]
    radiu = meta_ref[mo + 2]
    lmin = meta_ref[mo + 3]
    lmax = meta_ref[mo + 4]
    inv_w = meta_ref[mo + 5]
    w_f = meta_ref[mo + 6]
    base = meta_ref[mo + 7]   # level-local location index at tile start

    # ---- dense (8, lanes) tile of locations: n = base + sub*lanes + lane ----
    sub_f = jax.lax.broadcasted_iota(jnp.int32, (_SUB, lanes), 0).astype(jnp.float32)
    lane_f = jax.lax.broadcasted_iota(jnp.int32, (_SUB, lanes), 1).astype(jnp.float32)
    idx_f = base + sub_f * float(lanes) + lane_f

    # exact row/col decomposition: f32 estimate + one-step correction
    iy = jnp.floor(idx_f * inv_w)
    ix = idx_f - iy * w_f
    under = ix < 0.0
    iy = jnp.where(under, iy - 1.0, iy)
    ix = jnp.where(under, ix + w_f, ix)
    over = ix >= w_f
    iy = jnp.where(over, iy + 1.0, iy)
    ix = jnp.where(over, ix - w_f, ix)

    x = ix * stride + half
    y = iy * stride + half

    big = jnp.float32(_BIG_AREA)
    best_a = jnp.full((_SUB, lanes), _BIG_AREA, dtype=jnp.float32)
    zero = jnp.zeros((_SUB, lanes), dtype=jnp.float32)
    best_l = zero
    best_t = zero
    best_r = zero
    best_b = zero
    best_c = zero

    # ---- unrolled running-argmin over the (small, static) m gt boxes.
    # Per-box data is read as SMEM scalars and splat; only the running-best
    # arrays stay live, so there is no (m, N) materialization / spilling. ----
    boff = b * (m * _FPB)
    for k in range(m):
        o = boff + k * _FPB
        x0 = box_ref[o + 0]
        y0 = box_ref[o + 1]
        x1 = box_ref[o + 2]
        y1 = box_ref[o + 3]
        ck = box_ref[o + 4]
        cx = box_ref[o + 5]
        cy = box_ref[o + 6]

        l_k = x - x0
        t_k = y - y0
        r_k = x1 - x
        b_k = y1 - y

        off_min = jnp.minimum(jnp.minimum(l_k, t_k), jnp.minimum(r_k, b_k))
        off_max = jnp.maximum(jnp.maximum(l_k, t_k), jnp.maximum(r_k, b_k))
        # center sampling: c_r == -c_l, c_b == -c_t -> max == max(|c_l|, |c_t|)
        c_off_max = jnp.maximum(jnp.abs(x - cx), jnp.abs(y - cy))
        pos_k = ((off_min > 0.0) & (off_max > lmin) & (off_max <= lmax)
                 & (c_off_max < radiu))

        a_k = jnp.where(pos_k, (l_k + r_k) * (t_k + b_k), big)
        upd = a_k < best_a          # strict < keeps first occurrence (torch.min)
        best_a = jnp.where(upd, a_k, best_a)
        best_l = jnp.where(upd, l_k, best_l)
        best_t = jnp.where(upd, t_k, best_t)
        best_r = jnp.where(upd, r_k, best_r)
        best_b = jnp.where(upd, b_k, best_b)
        best_c = jnp.where(upd, ck, best_c)

    any_pos = best_a < big          # some positive box was assigned

    # ---- centerness of the selected box (exact divide; EUP has slack) ----
    lr_min = jnp.minimum(best_l, best_r)
    lr_max = jnp.maximum(best_l, best_r)
    tb_min = jnp.minimum(best_t, best_b)
    tb_max = jnp.maximum(best_t, best_b)
    cnt = jnp.sqrt(lr_min * tb_min / (lr_max * tb_max + 1e-10))

    # ---- fused 6-row output slab; each store is a dense (8, lanes) block ----
    neg1 = jnp.float32(-1.0)
    out_ref[0, 0] = jnp.where(any_pos, best_l, neg1)
    out_ref[0, 1] = jnp.where(any_pos, best_t, neg1)
    out_ref[0, 2] = jnp.where(any_pos, best_r, neg1)
    out_ref[0, 3] = jnp.where(any_pos, best_b, neg1)
    out_ref[0, 4] = jnp.where(any_pos, best_c, jnp.float32(0.0))
    out_ref[0, 5] = jnp.where(any_pos, cnt, neg1)


# ----------------------------------------------------------------------------
# wrapper: all levels in one pallas_call, SMEM boxes + per-tile metadata
# ----------------------------------------------------------------------------
def _pack_boxes(gt_boxes, classes):
    """Pack [x0,y0,x1,y1,cls,cx,cy] per box into a flat (B*m*7,) f32 array."""
    gt = gt_boxes.astype(jnp.float32)
    cls_f = classes.astype(jnp.float32)[..., None]
    cx = (gt[..., 0:1] + gt[..., 2:3]) * 0.5
    cy = (gt[..., 1:2] + gt[..., 3:4]) * 0.5
    return jnp.concatenate([gt, cls_f, cx, cy], axis=-1).reshape(-1)


def gen_targets_pallas(hw_list, gt_boxes, classes, strides, limit_range,
                       sample_radiu_ratio=1.5, max_tile_n=4096):
    B, m, _ = gt_boxes.shape
    L = len(hw_list)
    assert len(strides) == L == len(limit_range)

    level_n = [int(h) * int(w) for (h, w) in hw_list]
    max_n = max(level_n)
    # tile_n multiple of 8*128 (dense (8, lanes) blocks); capped for vreg pressure
    tile_n = min(max_tile_n, _cdiv(max_n, _MIN_TILE) * _MIN_TILE)
    lanes = tile_n // _SUB

    # static per-tile metadata (levels flattened into one tile axis)
    meta = []
    tile_start = []
    total_tiles = 0
    for (h, w), s, lr in zip(hw_list, strides, limit_range):
        n = h * w
        nt = _cdiv(n, tile_n)
        tile_start.append(total_tiles)
        for ti in range(nt):
            meta.extend([float(s), float(s // 2),
                         float(s) * float(sample_radiu_ratio),
                         float(lr[0]), float(lr[1]),
                         1.0 / float(w), float(w), float(ti * tile_n)])
        total_tiles += nt
    meta = jnp.asarray(np.asarray(meta, dtype=np.float32))

    packed = _pack_boxes(gt_boxes, classes)      # (B*m*7,) f32 -> SMEM

    kernel = functools.partial(_gen_targets_kernel, m=m, lanes=lanes)
    slab = pl.pallas_call(
        kernel,
        out_shape=jax.ShapeDtypeStruct((B, 6, total_tiles * _SUB, lanes),
                                       jnp.float32),
        grid=(B, total_tiles),
        in_specs=[
            pl.BlockSpec(memory_space=pltpu.MemorySpace.SMEM),   # packed boxes
            pl.BlockSpec(memory_space=pltpu.MemorySpace.SMEM),   # per-tile metadata
        ],
        out_specs=pl.BlockSpec((1, 6, _SUB, lanes), lambda b, t: (b, 0, t, 0)),
        compiler_params=pltpu.CompilerParams(
            dimension_semantics=("parallel", "parallel")),
    )(packed, meta)

    # (B, 6, tiles*8, lanes) -> (B, 6, tiles*tile_n); drop per-level tile padding
    slab = slab.reshape(B, 6, total_tiles * tile_n)
    parts = []
    for li in range(L):
        s0 = tile_start[li] * tile_n
        parts.append(slab[:, :, s0:s0 + level_n[li]])
    full = jnp.concatenate(parts, axis=2) if L > 1 else parts[0]
    # module contract is [B, sum(h*w), C]; a consumer that accepts channels-first
    # [B, C, N] could skip this transpose entirely.
    full = jnp.transpose(full, (0, 2, 1))                        # (B, sum_N, 6)
    reg_t = full[..., 0:4]
    cls_t = full[..., 4:5].astype(jnp.int32)
    cnt_t = full[..., 5:6]
    return cls_t, cnt_t, reg_t


# ----------------------------------------------------------------------------
# GenTargets module (JAX / Pallas version)
# ----------------------------------------------------------------------------
class GenTargets:
    def __init__(self, strides, limit_range):
        self.strides = strides
        self.limit_range = limit_range
        assert len(strides) == len(limit_range)

    def forward(self, inputs):
        cls_logits, cnt_logits, reg_preds = inputs[0]   # lists, NCHW (only shapes used)
        gt_boxes = inputs[1]                            # [B, m, 4] float32
        classes = inputs[2]                             # [B, m] int32
        assert len(self.strides) == len(cls_logits)
        hw_list = [(int(c.shape[2]), int(c.shape[3])) for c in cls_logits]
        return gen_targets_pallas(hw_list, gt_boxes, classes,
                                  self.strides, self.limit_range)

    __call__ = forward


# ----------------------------------------------------------------------------
# pure-JAX reference (mirrors the PyTorch code) for a correctness check
# ----------------------------------------------------------------------------
def _ref_gen_targets(hw_list, gt_boxes, classes, strides, limit_range, radiu_ratio=1.5):
    cls_all, cnt_all, reg_all = [], [], []
    for (h, w), stride, lrange in zip(hw_list, strides, limit_range):
        coords = coords_fmap2orig(h, w, stride)
        x = coords[:, 0]
        y = coords[:, 1]
        l_off = x[None, :, None] - gt_boxes[..., 0][:, None, :]
        t_off = y[None, :, None] - gt_boxes[..., 1][:, None, :]
        r_off = gt_boxes[..., 2][:, None, :] - x[None, :, None]
        b_off = gt_boxes[..., 3][:, None, :] - y[None, :, None]
        ltrb = jnp.stack([l_off, t_off, r_off, b_off], axis=-1)        # (B,N,m,4)
        areas = (ltrb[..., 0] + ltrb[..., 2]) * (ltrb[..., 1] + ltrb[..., 3])
        off_min = ltrb.min(-1)
        off_max = ltrb.max(-1)
        mask_in = off_min > 0
        mask_lvl = (off_max > lrange[0]) & (off_max <= lrange[1])
        radiu = stride * radiu_ratio
        cx = (gt_boxes[..., 0] + gt_boxes[..., 2]) / 2
        cy = (gt_boxes[..., 1] + gt_boxes[..., 3]) / 2
        c_l = x[None, :, None] - cx[:, None, :]
        c_t = y[None, :, None] - cy[:, None, :]
        c_r = cx[:, None, :] - x[None, :, None]
        c_b = cy[:, None, :] - y[None, :, None]
        c_off_max = jnp.stack([c_l, c_t, c_r, c_b], -1).max(-1)
        mask_center = c_off_max < radiu
        mask_pos = mask_in & mask_lvl & mask_center
        areas_m = jnp.where(mask_pos, areas, _BIG_AREA)
        idx = jnp.argmin(areas_m, axis=-1)                              # (B,N)
        reg = jnp.take_along_axis(ltrb, idx[..., None, None], axis=2)[:, :, 0, :]
        cls_b = jnp.broadcast_to(classes[:, None, :], areas.shape)
        cls_t = jnp.take_along_axis(cls_b, idx[..., None], axis=-1)     # (B,N,1)
        lr_min = jnp.minimum(reg[..., 0], reg[..., 2])
        lr_max = jnp.maximum(reg[..., 0], reg[..., 2])
        tb_min = jnp.minimum(reg[..., 1], reg[..., 3])
        tb_max = jnp.maximum(reg[..., 1], reg[..., 3])
        cnt = jnp.sqrt(lr_min * tb_min / (lr_max * tb_max + 1e-10))[..., None]
        mask_pos_2 = mask_pos.sum(-1) >= 1
        cls_t = jnp.where(mask_pos_2[..., None], cls_t, 0).astype(jnp.int32)
        cnt = jnp.where(mask_pos_2[..., None], cnt, -1.0)
        reg = jnp.where(mask_pos_2[..., None], reg, -1.0)
        cls_all.append(cls_t)
        cnt_all.append(cnt)
        reg_all.append(reg)
    return (
        jnp.concatenate(cls_all, axis=1),
        jnp.concatenate(cnt_all, axis=1),
        jnp.concatenate(reg_all, axis=1),
    )


# ----------------------------------------------------------------------------
if __name__ == "__main__":
    key = jax.random.PRNGKey(0)
    B, class_num, m = 2, 4, 8
    strides = [8, 16, 32]
    limit_range = [[-1, 64], [64, 128], [128, 999999]]
    hw_list = [(16, 16), (8, 8), (4, 4)]

    k1, k2, k3, k4 = jax.random.split(key, 4)

    # dummy logits (NCHW) — GenTargets only consumes their spatial shapes
    cls_logits = [
        jax.random.normal(k1, (B, class_num, h, w), dtype=jnp.float32) for (h, w) in hw_list
    ]
    cnt_logits = [jnp.zeros((B, 1, h, w), jnp.float32) for (h, w) in hw_list]
    reg_preds = [jnp.zeros((B, 4, h, w), jnp.float32) for (h, w) in hw_list]

    # deterministic gt boxes (x0 < x1, y0 < y1) and classes
    xy0 = jax.random.uniform(k2, (B, m, 2), minval=0.0, maxval=60.0)
    wh = jax.random.uniform(k3, (B, m, 2), minval=8.0, maxval=90.0)
    gt_boxes = jnp.concatenate([xy0, xy0 + wh], axis=-1).astype(jnp.float32)  # [B,m,4]
    classes = jax.random.randint(k4, (B, m), 1, class_num + 1, dtype=jnp.int32)

    gen = GenTargets(strides, limit_range)
    cls_t, cnt_t, reg_t = gen([(cls_logits, cnt_logits, reg_preds), gt_boxes, classes])
    jax.block_until_ready((cls_t, cnt_t, reg_t))

    # correctness check against the pure-JAX reference
    cls_r, cnt_r, reg_r = _ref_gen_targets(hw_list, gt_boxes, classes, strides, limit_range)
    assert cls_t.shape == cls_r.shape and cnt_t.shape == cnt_r.shape and reg_t.shape == reg_r.shape
    assert np.array_equal(np.asarray(cls_t), np.asarray(cls_r))
    assert np.allclose(np.asarray(cnt_t), np.asarray(cnt_r), atol=1e-4)
    assert np.allclose(np.asarray(reg_t), np.asarray(reg_r), atol=1e-5)

    print("KERNEL_OK")
</pallas_src>

<mosaic_0001>
module attributes {stable_mosaic.version = 11 : i64} {
  func.func @_gen_targets_kernel(%arg0: i32, %arg1: i32, %arg2: memref<112xf32, #tpu.memory_space<smem>>, %arg3: memref<24xf32, #tpu.memory_space<smem>>, %arg4: memref<1x6x8x128xf32, #tpu.memory_space<vmem>>) attributes {dimension_semantics = [#tpu.dimension_semantics<parallel>, #tpu.dimension_semantics<parallel>], iteration_bounds = array<i64: 2, 3>, scalar_prefetch = 0 : i64, scratch_operands = 0 : i64, tpu.core_type = #tpu.core_type<tc>, window_params = [{transform_indices = @transform_0, window_bounds = array<i64: 112>}, {transform_indices = @transform_1, window_bounds = array<i64: 24>}, {transform_indices = @transform_2, window_bounds = array<i64: 1, 6, 8, 128>}]} {
    %c8_i32 = arith.constant 8 : i32
    %0 = arith.muli %arg1, %c8_i32 : i32
    %c0_i32 = arith.constant 0 : i32
    %1 = arith.addi %0, %c0_i32 : i32
    %2 = arith.index_cast %1 : i32 to index
    %3 = memref.load %arg3[%2] : memref<24xf32, #tpu.memory_space<smem>>
    %c1_i32 = arith.constant 1 : i32
    %4 = arith.addi %0, %c1_i32 : i32
    %5 = arith.index_cast %4 : i32 to index
    %6 = memref.load %arg3[%5] : memref<24xf32, #tpu.memory_space<smem>>
    %c2_i32 = arith.constant 2 : i32
    %7 = arith.addi %0, %c2_i32 : i32
    %8 = arith.index_cast %7 : i32 to index
    %9 = memref.load %arg3[%8] : memref<24xf32, #tpu.memory_space<smem>>
    %c3_i32 = arith.constant 3 : i32
    %10 = arith.addi %0, %c3_i32 : i32
    %11 = arith.index_cast %10 : i32 to index
    %12 = memref.load %arg3[%11] : memref<24xf32, #tpu.memory_space<smem>>
    %c4_i32 = arith.constant 4 : i32
    %13 = arith.addi %0, %c4_i32 : i32
    %14 = arith.index_cast %13 : i32 to index
    %15 = memref.load %arg3[%14] : memref<24xf32, #tpu.memory_space<smem>>
    %c5_i32 = arith.constant 5 : i32
    %16 = arith.addi %0, %c5_i32 : i32
    %17 = arith.index_cast %16 : i32 to index
    %18 = memref.load %arg3[%17] : memref<24xf32, #tpu.memory_space<smem>>
    %c6_i32 = arith.constant 6 : i32
    %19 = arith.addi %0, %c6_i32 : i32
    %20 = arith.index_cast %19 : i32 to index
    %21 = memref.load %arg3[%20] : memref<24xf32, #tpu.memory_space<smem>>
    %c7_i32 = arith.constant 7 : i32
    %22 = arith.addi %0, %c7_i32 : i32
    %23 = arith.index_cast %22 : i32 to index
    %24 = memref.load %arg3[%23] : memref<24xf32, #tpu.memory_space<smem>>
    %25 = tpu.iota {dimensions = array<i32: 0>} : vector<8x128xi32>
    %26 = arith.sitofp %25 : vector<8x128xi32> to vector<8x128xf32>
    %27 = tpu.iota {dimensions = array<i32: 1>} : vector<8x128xi32>
    %28 = arith.sitofp %27 : vector<8x128xi32> to vector<8x128xf32>
    %cst = arith.constant 1.280000e+02 : f32
    %29 = vector.broadcast %cst : f32 to vector<8x128xf32>
    %30 = arith.mulf %26, %29 : vector<8x128xf32>
    %31 = vector.broadcast %24 : f32 to vector<8x128xf32>
    %32 = arith.addf %31, %30 : vector<8x128xf32>
    %33 = arith.addf %32, %28 : vector<8x128xf32>
    %34 = vector.broadcast %18 : f32 to vector<8x128xf32>
    %35 = arith.mulf %33, %34 : vector<8x128xf32>
    %36 = math.floor %35 : vector<8x128xf32>
    %37 = vector.broadcast %21 : f32 to vector<8x128xf32>
    %38 = arith.mulf %36, %37 : vector<8x128xf32>
    %39 = arith.subf %33, %38 : vector<8x128xf32>
    %cst_0 = arith.constant 0.000000e+00 : f32
    %40 = vector.broadcast %cst_0 : f32 to vector<8x128xf32>
    %41 = arith.cmpf olt, %39, %40 : vector<8x128xf32>
    %cst_1 = arith.constant 1.000000e+00 : f32
    %42 = vector.broadcast %cst_1 : f32 to vector<8x128xf32>
    %43 = arith.subf %36, %42 : vector<8x128xf32>
    %44 = arith.select %41, %43, %36 : vector<8x128xi1>, vector<8x128xf32>
    %45 = vector.broadcast %21 : f32 to vector<8x128xf32>
    %46 = arith.addf %39, %45 : vector<8x128xf32>
    %47 = arith.select %41, %46, %39 : vector<8x128xi1>, vector<8x128xf32>
    %48 = vector.broadcast %21 : f32 to vector<8x128xf32>
    %49 = arith.cmpf oge, %47, %48 : vector<8x128xf32>
    %cst_2 = arith.constant 1.000000e+00 : f32
    %50 = vector.broadcast %cst_2 : f32 to vector<8x128xf32>
    %51 = arith.addf %44, %50 : vector<8x128xf32>
    %52 = arith.select %49, %51, %44 : vector<8x128xi1>, vector<8x128xf32>
    %53 = vector.broadcast %21 : f32 to vector<8x128xf32>
    %54 = arith.subf %47, %53 : vector<8x128xf32>
    %55 = arith.select %49, %54, %47 : vector<8x128xi1>, vector<8x128xf32>
    %56 = vector.broadcast %3 : f32 to vector<8x128xf32>
    %57 = arith.mulf %55, %56 : vector<8x128xf32>
    %58 = vector.broadcast %6 : f32 to vector<8x128xf32>
    %59 = arith.addf %57, %58 : vector<8x128xf32>
    %60 = vector.broadcast %3 : f32 to vector<8x128xf32>
    %61 = arith.mulf %52, %60 : vector<8x128xf32>
    %62 = vector.broadcast %6 : f32 to vector<8x128xf32>
    %63 = arith.addf %61, %62 : vector<8x128xf32>
    %cst_3 = arith.constant 1.000000e+08 : f32
    %64 = vector.broadcast %cst_3 : f32 to vector<8x128xf32>
    %cst_4 = arith.constant 0.000000e+00 : f32
    %65 = vector.broadcast %cst_4 : f32 to vector<8x128xf32>
    %c56_i32 = arith.constant 56 : i32
    %66 = arith.muli %arg0, %c56_i32 : i32
    %c0_i32_5 = arith.constant 0 : i32
    %67 = arith.addi %66, %c0_i32_5 : i32
    %c0_i32_6 = arith.constant 0 : i32
    %68 = arith.addi %67, %c0_i32_6 : i32
    %69 = arith.index_cast %68 : i32 to index
    %70 = memref.load %arg2[%69] : memref<112xf32, #tpu.memory_space<smem>>
    %c1_i32_7 = arith.constant 1 : i32
    %71 = arith.addi %67, %c1_i32_7 : i32
    %72 = arith.index_cast %71 : i32 to index
    %73 = memref.load %arg2[%72] : memref<112xf32, #tpu.memory_space<smem>>
    %c2_i32_8 = arith.constant 2 : i32
    %74 = arith.addi %67, %c2_i32_8 : i32
    %75 = arith.index_cast %74 : i32 to index
    %76 = memref.load %arg2[%75] : memref<112xf32, #tpu.memory_space<smem>>
    %c3_i32_9 = arith.constant 3 : i32
    %77 = arith.addi %67, %c3_i32_9 : i32
    %78 = arith.index_cast %77 : i32 to index
    %79 = memref.load %arg2[%78] : memref<112xf32, #tpu.memory_space<smem>>
    %c4_i32_10 = arith.constant 4 : i32
    %80 = arith.addi %67, %c4_i32_10 : i32
    %81 = arith.index_cast %80 : i32 to index
    %82 = memref.load %arg2[%81] : memref<112xf32, #tpu.memory_space<smem>>
    %c5_i32_11 = arith.constant 5 : i32
    %83 = arith.addi %67, %c5_i32_11 : i32
    %84 = arith.index_cast %83 : i32 to index
    %85 = memref.load %arg2[%84] : memref<112xf32, #tpu.memory_space<smem>>
    %c6_i32_12 = arith.constant 6 : i32
    %86 = arith.addi %67, %c6_i32_12 : i32
    %87 = arith.index_cast %86 : i32 to index
    %88 = memref.load %arg2[%87] : memref<112xf32, #tpu.memory_space<smem>>
    %89 = vector.broadcast %70 : f32 to vector<8x128xf32>
    %90 = arith.subf %59, %89 : vector<8x128xf32>
    %91 = vector.broadcast %73 : f32 to vector<8x128xf32>
    %92 = arith.subf %63, %91 : vector<8x128xf32>
    %93 = vector.broadcast %76 : f32 to vector<8x128xf32>
    %94 = arith.subf %93, %59 : vector<8x128xf32>
    %95 = vector.broadcast %79 : f32 to vector<8x128xf32>
    %96 = arith.subf %95, %63 : vector<8x128xf32>
    %97 = arith.minimumf %90, %92 : vector<8x128xf32>
    %98 = arith.minimumf %94, %96 : vector<8x128xf32>
    %99 = arith.minimumf %97, %98 : vector<8x128xf32>
    %100 = arith.maximumf %90, %92 : vector<8x128xf32>
    %101 = arith.maximumf %94, %96 : vector<8x128xf32>
    %102 = arith.maximumf %100, %101 : vector<8x128xf32>
    %103 = vector.broadcast %85 : f32 to vector<8x128xf32>
    %104 = arith.subf %59, %103 : vector<8x128xf32>
    %105 = math.absf %104 : vector<8x128xf32>
    %106 = vector.broadcast %88 : f32 to vector<8x128xf32>
    %107 = arith.subf %63, %106 : vector<8x128xf32>
    %108 = math.absf %107 : vector<8x128xf32>
    %109 = arith.maximumf %105, %108 : vector<8x128xf32>
    %cst_13 = arith.constant 0.000000e+00 : f32
    %110 = vector.broadcast %cst_13 : f32 to vector<8x128xf32>
    %111 = arith.cmpf ogt, %99, %110 : vector<8x128xf32>
    %112 = vector.broadcast %12 : f32 to vector<8x128xf32>
    %113 = arith.cmpf ogt, %102, %112 : vector<8x128xf32>
    %114 = arith.andi %111, %113 : vector<8x128xi1>
    %115 = vector.broadcast %15 : f32 to vector<8x128xf32>
    %116 = arith.cmpf ole, %102, %115 : vector<8x128xf32>
    %117 = arith.andi %114, %116 : vector<8x128xi1>
    %118 = vector.broadcast %9 : f32 to vector<8x128xf32>
    %119 = arith.cmpf olt, %109, %118 : vector<8x128xf32>
    %120 = arith.andi %117, %119 : vector<8x128xi1>
    %121 = arith.addf %90, %94 : vector<8x128xf32>
    %122 = arith.addf %92, %96 : vector<8x128xf32>
    %123 = arith.mulf %121, %122 : vector<8x128xf32>
    %cst_14 = arith.constant 1.000000e+08 : f32
    %124 = vector.broadcast %cst_14 : f32 to vector<8x128xf32>
    %125 = arith.select %120, %123, %124 : vector<8x128xi1>, vector<8x128xf32>
    %126 = arith.cmpf olt, %125, %64 : vector<8x128xf32>
    %127 = arith.select %126, %125, %64 : vector<8x128xi1>, vector<8x128xf32>
    %128 = arith.select %126, %90, %65 : vector<8x128xi1>, vector<8x128xf32>
    %129 = arith.select %126, %92, %65 : vector<8x128xi1>, vector<8x128xf32>
    %130 = arith.select %126, %94, %65 : vector<8x128xi1>, vector<8x128xf32>
    %131 = arith.select %126, %96, %65 : vector<8x128xi1>, vector<8x128xf32>
    %132 = vector.broadcast %82 : f32 to vector<8x128xf32>
    %133 = arith.select %126, %132, %65 : vector<8x128xi1>, vector<8x128xf32>
    %c7_i32_15 = arith.constant 7 : i32
    %134 = arith.addi %66, %c7_i32_15 : i32
    %c0_i32_16 = arith.constant 0 : i32
    %135 = arith.addi %134, %c0_i32_16 : i32
    %136 = arith.index_cast %135 : i32 to index
    %137 = memref.load %arg2[%136] : memref<112xf32, #tpu.memory_space<smem>>
    %c1_i32_17 = arith.constant 1 : i32
    %138 = arith.addi %134, %c1_i32_17 : i32
    %139 = arith.index_cast %138 : i32 to index
    %140 = memref.load %arg2[%139] : memref<112xf32, #tpu.memory_space<smem>>
    %c2_i32_18 = arith.constant 2 : i32
    %141 = arith.addi %134, %c2_i32_18 : i32
    %142 = arith.index_cast %141 : i32 to index
    %143 = memref.load %arg2[%142] : memref<112xf32, #tpu.memory_space<smem>>
    %c3_i32_19 = arith.constant 3 : i32
    %144 = arith.addi %134, %c3_i32_19 : i32
    %145 = arith.index_cast %144 : i32 to index
    %146 = memref.load %arg2[%145] : memref<112xf32, #tpu.memory_space<smem>>
    %c4_i32_20 = arith.constant 4 : i32
    %147 = arith.addi %134, %c4_i32_20 : i32
    %148 = arith.index_cast %147 : i32 to index
    %149 = memref.load %arg2[%148] : memref<112xf32, #tpu.memory_space<smem>>
    %c5_i32_21 = arith.constant 5 : i32
    %150 = arith.addi %134, %c5_i32_21 : i32
    %151 = arith.index_cast %150 : i32 to index
    %152 = memref.load %arg2[%151] : memref<112xf32, #tpu.memory_space<smem>>
    %c6_i32_22 = arith.constant 6 : i32
    %153 = arith.addi %134, %c6_i32_22 : i32
    %154 = arith.index_cast %153 : i32 to index
    %155 = memref.load %arg2[%154] : memref<112xf32, #tpu.memory_space<smem>>
    %156 = vector.broadcast %137 : f32 to vector<8x128xf32>
    %157 = arith.subf %59, %156 : vector<8x128xf32>
    %158 = vector.broadcast %140 : f32 to vector<8x128xf32>
    %159 = arith.subf %63, %158 : vector<8x128xf32>
    %160 = vector.broadcast %143 : f32 to vector<8x128xf32>
    %161 = arith.subf %160, %59 : vector<8x128xf32>
    %162 = vector.broadcast %146 : f32 to vector<8x128xf32>
    %163 = arith.subf %162, %63 : vector<8x128xf32>
    %164 = arith.minimumf %157, %159 : vector<8x128xf32>
    %165 = arith.minimumf %161, %163 : vector<8x128xf32>
    %166 = arith.minimumf %164, %165 : vector<8x128xf32>
    %167 = arith.maximumf %157, %159 : vector<8x128xf32>
    %168 = arith.maximumf %161, %163 : vector<8x128xf32>
    %169 = arith.maximumf %167, %168 : vector<8x128xf32>
    %170 = vector.broadcast %152 : f32 to vector<8x128xf32>
    %171 = arith.subf %59, %170 : vector<8x128xf32>
    %172 = math.absf %171 : vector<8x128xf32>
    %173 = vector.broadcast %155 : f32 to vector<8x128xf32>
    %174 = arith.subf %63, %173 : vector<8x128xf32>
    %175 = math.absf %174 : vector<8x128xf32>
    %176 = arith.maximumf %172, %175 : vector<8x128xf32>
    %cst_23 = arith.constant 0.000000e+00 : f32
    %177 = vector.broadcast %cst_23 : f32 to vector<8x128xf32>
    %178 = arith.cmpf ogt, %166, %177 : vector<8x128xf32>
    %179 = vector.broadcast %12 : f32 to vector<8x128xf32>
    %180 = arith.cmpf ogt, %169, %179 : vector<8x128xf32>
    %181 = arith.andi %178, %180 : vector<8x128xi1>
    %182 = vector.broadcast %15 : f32 to vector<8x128xf32>
    %183 = arith.cmpf ole, %169, %182 : vector<8x128xf32>
    %184 = arith.andi %181, %183 : vector<8x128xi1>
    %185 = vector.broadcast %9 : f32 to vector<8x128xf32>
    %186 = arith.cmpf olt, %176, %185 : vector<8x128xf32>
    %187 = arith.andi %184, %186 : vector<8x128xi1>
    %188 = arith.addf %157, %161 : vector<8x128xf32>
    %189 = arith.addf %159, %163 : vector<8x128xf32>
    %190 = arith.mulf %188, %189 : vector<8x128xf32>
    %cst_24 = arith.constant 1.000000e+08 : f32
    %191 = vector.broadcast %cst_24 : f32 to vector<8x128xf32>
    %192 = arith.select %187, %190, %191 : vector<8x128xi1>, vector<8x128xf32>
    %193 = arith.cmpf olt, %192, %127 : vector<8x128xf32>
    %194 = arith.select %193, %192, %127 : vector<8x128xi1>, vector<8x128xf32>
    %195 = arith.select %193, %157, %128 : vector<8x128xi1>, vector<8x128xf32>
    %196 = arith.select %193, %159, %129 : vector<8x128xi1>, vector<8x128xf32>
    %197 = arith.select %193, %161, %130 : vector<8x128xi1>, vector<8x128xf32>
    %198 = arith.select %193, %163, %131 : vector<8x128xi1>, vector<8x128xf32>
    %199 = vector.broadcast %149 : f32 to vector<8x128xf32>
    %200 = arith.select %193, %199, %133 : vector<8x128xi1>, vector<8x128xf32>
    %c14_i32 = arith.constant 14 : i32
    %201 = arith.addi %66, %c14_i32 : i32
    %c0_i32_25 = arith.constant 0 : i32
    %202 = arith.addi %201, %c0_i32_25 : i32
    %203 = arith.index_cast %202 : i32 to index
    %204 = memref.load %arg2[%203] : memref<112xf32, #tpu.memory_space<smem>>
    %c1_i32_26 = arith.constant 1 : i32
    %205 = arith.addi %201, %c1_i32_26 : i32
    %206 = arith.index_cast %205 : i32 to index
    %207 = memref.load %arg2[%206] : memref<112xf32, #tpu.memory_space<smem>>
    %c2_i32_27 = arith.constant 2 : i32
    %208 = arith.addi %201, %c2_i32_27 : i32
    %209 = arith.index_cast %208 : i32 to index
    %210 = memref.load %arg2[%209] : memref<112xf32, #tpu.memory_space<smem>>
    %c3_i32_28 = arith.constant 3 : i32
    %211 = arith.addi %201, %c3_i32_28 : i32
    %212 = arith.index_cast %211 : i32 to index
    %213 = memref.load %arg2[%212] : memref<112xf32, #tpu.memory_space<smem>>
    %c4_i32_29 = arith.constant 4 : i32
    %214 = arith.addi %201, %c4_i32_29 : i32
    %215 = arith.index_cast %214 : i32 to index
    %216 = memref.load %arg2[%215] : memref<112xf32, #tpu.memory_space<smem>>
    %c5_i32_30 = arith.constant 5 : i32
    %217 = arith.addi %201, %c5_i32_30 : i32
    %218 = arith.index_cast %217 : i32 to index
    %219 = memref.load %arg2[%218] : memref<112xf32, #tpu.memory_space<smem>>
    %c6_i32_31 = arith.constant 6 : i32
    %220 = arith.addi %201, %c6_i32_31 : i32
    %221 = arith.index_cast %220 : i32 to index
    %222 = memref.load %arg2[%221] : memref<112xf32, #tpu.memory_space<smem>>
    %223 = vector.broadcast %204 : f32 to vector<8x128xf32>
    %224 = arith.subf %59, %223 : vector<8x128xf32>
    %225 = vector.broadcast %207 : f32 to vector<8x128xf32>
    %226 = arith.subf %63, %225 : vector<8x128xf32>
    %227 = vector.broadcast %210 : f32 to vector<8x128xf32>
    %228 = arith.subf %227, %59 : vector<8x128xf32>
    %229 = vector.broadcast %213 : f32 to vector<8x128xf32>
    %230 = arith.subf %229, %63 : vector<8x128xf32>
    %231 = arith.minimumf %224, %226 : vector<8x128xf32>
    %232 = arith.minimumf %228, %230 : vector<8x128xf32>
    %233 = arith.minimumf %231, %232 : vector<8x128xf32>
    %234 = arith.maximumf %224, %226 : vector<8x128xf32>
    %235 = arith.maximumf %228, %230 : vector<8x128xf32>
    %236 = arith.maximumf %234, %235 : vector<8x128xf32>
    %237 = vector.broadcast %219 : f32 to vector<8x128xf32>
    %238 = arith.subf %59, %237 : vector<8x128xf32>
    %239 = math.absf %238 : vector<8x128xf32>
    %240 = vector.broadcast %222 : f32 to vector<8x128xf32>
    %241 = arith.subf %63, %240 : vector<8x128xf32>
    %242 = math.absf %241 : vector<8x128xf32>
    %243 = arith.maximumf %239, %242 : vector<8x128xf32>
    %cst_32 = arith.constant 0.000000e+00 : f32
    %244 = vector.broadcast %cst_32 : f32 to vector<8x128xf32>
    %245 = arith.cmpf ogt, %233, %244 : vector<8x128xf32>
    %246 = vector.broadcast %12 : f32 to vector<8x128xf32>
    %247 = arith.cmpf ogt, %236, %246 : vector<8x128xf32>
    %248 = arith.andi %245, %247 : vector<8x128xi1>
    %249 = vector.broadcast %15 : f32 to vector<8x128xf32>
    %250 = arith.cmpf ole, %236, %249 : vector<8x128xf32>
    %251 = arith.andi %248, %250 : vector<8x128xi1>
    %252 = vector.broadcast %9 : f32 to vector<8x128xf32>
    %253 = arith.cmpf olt, %243, %252 : vector<8x128xf32>
    %254 = arith.andi %251, %253 : vector<8x128xi1>
    %255 = arith.addf %224, %228 : vector<8x128xf32>
    %256 = arith.addf %226, %230 : vector<8x128xf32>
    %257 = arith.mulf %255, %256 : vector<8x128xf32>
    %cst_33 = arith.constant 1.000000e+08 : f32
    %258 = vector.broadcast %cst_33 : f32 to vector<8x128xf32>
    %259 = arith.select %254, %257, %258 : vector<8x128xi1>, vector<8x128xf32>
    %260 = arith.cmpf olt, %259, %194 : vector<8x128xf32>
    %261 = arith.select %260, %259, %194 : vector<8x128xi1>, vector<8x128xf32>
    %262 = arith.select %260, %224, %195 : vector<8x128xi1>, vector<8x128xf32>
    %263 = arith.select %260, %226, %196 : vector<8x128xi1>, vector<8x128xf32>
    %264 = arith.select %260, %228, %197 : vector<8x128xi1>, vector<8x128xf32>
    %265 = arith.select %260, %230, %198 : vector<8x128xi1>, vector<8x128xf32>
    %266 = vector.broadcast %216 : f32 to vector<8x128xf32>
    %267 = arith.select %260, %266, %200 : vector<8x128xi1>, vector<8x128xf32>
    %c21_i32 = arith.constant 21 : i32
    %268 = arith.addi %66, %c21_i32 : i32
    %c0_i32_34 = arith.constant 0 : i32
    %269 = arith.addi %268, %c0_i32_34 : i32
    %270 = arith.index_cast %269 : i32 to index
    %271 = memref.load %arg2[%270] : memref<112xf32, #tpu.memory_space<smem>>
    %c1_i32_35 = arith.constant 1 : i32
    %272 = arith.addi %268, %c1_i32_35 : i32
    %273 = arith.index_cast %272 : i32 to index
    %274 = memref.load %arg2[%273] : memref<112xf32, #tpu.memory_space<smem>>
    %c2_i32_36 = arith.constant 2 : i32
    %275 = arith.addi %268, %c2_i32_36 : i32
    %276 = arith.index_cast %275 : i32 to index
    %277 = memref.load %arg2[%276] : memref<112xf32, #tpu.memory_space<smem>>
    %c3_i32_37 = arith.constant 3 : i32
    %278 = arith.addi %268, %c3_i32_37 : i32
    %279 = arith.index_cast %278 : i32 to index
    %280 = memref.load %arg2[%279] : memref<112xf32, #tpu.memory_space<smem>>
    %c4_i32_38 = arith.constant 4 : i32
    %281 = arith.addi %268, %c4_i32_38 : i32
    %282 = arith.index_cast %281 : i32 to index
    %283 = memref.load %arg2[%282] : memref<112xf32, #tpu.memory_space<smem>>
    %c5_i32_39 = arith.constant 5 : i32
    %284 = arith.addi %268, %c5_i32_39 : i32
    %285 = arith.index_cast %284 : i32 to index
    %286 = memref.load %arg2[%285] : memref<112xf32, #tpu.memory_space<smem>>
    %c6_i32_40 = arith.constant 6 : i32
    %287 = arith.addi %268, %c6_i32_40 : i32
    %288 = arith.index_cast %287 : i32 to index
    %289 = memref.load %arg2[%288] : memref<112xf32, #tpu.memory_space<smem>>
    %290 = vector.broadcast %271 : f32 to vector<8x128xf32>
    %291 = arith.subf %59, %290 : vector<8x128xf32>
    %292 = vector.broadcast %274 : f32 to vector<8x128xf32>
    %293 = arith.subf %63, %292 : vector<8x128xf32>
    %294 = vector.broadcast %277 : f32 to vector<8x128xf32>
    %295 = arith.subf %294, %59 : vector<8x128xf32>
    %296 = vector.broadcast %280 : f32 to vector<8x128xf32>
    %297 = arith.subf %296, %63 : vector<8x128xf32>
    %298 = arith.minimumf %291, %293 : vector<8x128xf32>
    %299 = arith.minimumf %295, %297 : vector<8x128xf32>
    %300 = arith.minimumf %298, %299 : vector<8x128xf32>
    %301 = arith.maximumf %291, %293 : vector<8x128xf32>
    %302 = arith.maximumf %295, %297 : vector<8x128xf32>
    %303 = arith.maximumf %301, %302 : vector<8x128xf32>
    %304 = vector.broadcast %286 : f32 to vector<8x128xf32>
    %305 = arith.subf %59, %304 : vector<8x128xf32>
    %306 = math.absf %305 : vector<8x128xf32>
    %307 = vector.broadcast %289 : f32 to vector<8x128xf32>
    %308 = arith.subf %63, %307 : vector<8x128xf32>
    %309 = math.absf %308 : vector<8x128xf32>
    %310 = arith.maximumf %306, %309 : vector<8x128xf32>
    %cst_41 = arith.constant 0.000000e+00 : f32
    %311 = vector.broadcast %cst_41 : f32 to vector<8x128xf32>
    %312 = arith.cmpf ogt, %300, %311 : vector<8x128xf32>
    %313 = vector.broadcast %12 : f32 to vector<8x128xf32>
    %314 = arith.cmpf ogt, %303, %313 : vector<8x128xf32>
    %315 = arith.andi %312, %314 : vector<8x128xi1>
    %316 = vector.broadcast %15 : f32 to vector<8x128xf32>
    %317 = arith.cmpf ole, %303, %316 : vector<8x128xf32>
    %318 = arith.andi %315, %317 : vector<8x128xi1>
    %319 = vector.broadcast %9 : f32 to vector<8x128xf32>
    %320 = arith.cmpf olt, %310, %319 : vector<8x128xf32>
    %321 = arith.andi %318, %320 : vector<8x128xi1>
    %322 = arith.addf %291, %295 : vector<8x128xf32>
    %323 = arith.addf %293, %297 : vector<8x128xf32>
    %324 = arith.mulf %322, %323 : vector<8x128xf32>
    %cst_42 = arith.constant 1.000000e+08 : f32
    %325 = vector.broadcast %cst_42 : f32 to vector<8x128xf32>
    %326 = arith.select %321, %324, %325 : vector<8x128xi1>, vector<8x128xf32>
    %327 = arith.cmpf olt, %326, %261 : vector<8x128xf32>
    %328 = arith.select %327, %326, %261 : vector<8x128xi1>, vector<8x128xf32>
    %329 = arith.select %327, %291, %262 : vector<8x128xi1>, vector<8x128xf32>
    %330 = arith.select %327, %293, %263 : vector<8x128xi1>, vector<8x128xf32>
    %331 = arith.select %327, %295, %264 : vector<8x128xi1>, vector<8x128xf32>
    %332 = arith.select %327, %297, %265 : vector<8x128xi1>, vector<8x128xf32>
    %333 = vector.broadcast %283 : f32 to vector<8x128xf32>
    %334 = arith.select %327, %333, %267 : vector<8x128xi1>, vector<8x128xf32>
    %c28_i32 = arith.constant 28 : i32
    %335 = arith.addi %66, %c28_i32 : i32
    %c0_i32_43 = arith.constant 0 : i32
    %336 = arith.addi %335, %c0_i32_43 : i32
    %337 = arith.index_cast %336 : i32 to index
    %338 = memref.load %arg2[%337] : memref<112xf32, #tpu.memory_space<smem>>
    %c1_i32_44 = arith.constant 1 : i32
    %339 = arith.addi %335, %c1_i32_44 : i32
    %340 = arith.index_cast %339 : i32 to index
    %341 = memref.load %arg2[%340] : memref<112xf32, #tpu.memory_space<smem>>
    %c2_i32_45 = arith.constant 2 : i32
    %342 = arith.addi %335, %c2_i32_45 : i32
    %343 = arith.index_cast %342 : i32 to index
    %344 = memref.load %arg2[%343] : memref<112xf32, #tpu.memory_space<smem>>
    %c3_i32_46 = arith.constant 3 : i32
    %345 = arith.addi %335, %c3_i32_46 : i32
    %346 = arith.index_cast %345 : i32 to index
    %347 = memref.load %arg2[%346] : memref<112xf32, #tpu.memory_space<smem>>
    %c4_i32_47 = arith.constant 4 : i32
    %348 = arith.addi %335, %c4_i32_47 : i32
    %349 = arith.index_cast %348 : i32 to index
    %350 = memref.load %arg2[%349] : memref<112xf32, #tpu.memory_space<smem>>
    %c5_i32_48 = arith.constant 5 : i32
    %351 = arith.addi %335, %c5_i32_48 : i32
    %352 = arith.index_cast %351 : i32 to index
    %353 = memref.load %arg2[%352] : memref<112xf32, #tpu.memory_space<smem>>
    %c6_i32_49 = arith.constant 6 : i32
    %354 = arith.addi %335, %c6_i32_49 : i32
    %355 = arith.index_cast %354 : i32 to index
    %356 = memref.load %arg2[%355] : memref<112xf32, #tpu.memory_space<smem>>
    %357 = vector.broadcast %338 : f32 to vector<8x128xf32>
    %358 = arith.subf %59, %357 : vector<8x128xf32>
    %359 = vector.broadcast %341 : f32 to vector<8x128xf32>
    %360 = arith.subf %63, %359 : vector<8x128xf32>
    %361 = vector.broadcast %344 : f32 to vector<8x128xf32>
    %362 = arith.subf %361, %59 : vector<8x128xf32>
    %363 = vector.broadcast %347 : f32 to vector<8x128xf32>
    %364 = arith.subf %363, %63 : vector<8x128xf32>
    %365 = arith.minimumf %358, %360 : vector<8x128xf32>
    %366 = arith.minimumf %362, %364 : vector<8x128xf32>
    %367 = arith.minimumf %365, %366 : vector<8x128xf32>
    %368 = arith.maximumf %358, %360 : vector<8x128xf32>
    %369 = arith.maximumf %362, %364 : vector<8x128xf32>
    %370 = arith.maximumf %368, %369 : vector<8x128xf32>
    %371 = vector.broadcast %353 : f32 to vector<8x128xf32>
    %372 = arith.subf %59, %371 : vector<8x128xf32>
    %373 = math.absf %372 : vector<8x128xf32>
    %374 = vector.broadcast %356 : f32 to vector<8x128xf32>
    %375 = arith.subf %63, %374 : vector<8x128xf32>
    %376 = math.absf %375 : vector<8x128xf32>
    %377 = arith.maximumf %373, %376 : vector<8x128xf32>
    %cst_50 = arith.constant 0.000000e+00 : f32
    %378 = vector.broadcast %cst_50 : f32 to vector<8x128xf32>
    %379 = arith.cmpf ogt, %367, %378 : vector<8x128xf32>
    %380 = vector.broadcast %12 : f32 to vector<8x128xf32>
    %381 = arith.cmpf ogt, %370, %380 : vector<8x128xf32>
    %382 = arith.andi %379, %381 : vector<8x128xi1>
    %383 = vector.broadcast %15 : f32 to vector<8x128xf32>
    %384 = arith.cmpf ole, %370, %383 : vector<8x128xf32>
    %385 = arith.andi %382, %384 : vector<8x128xi1>
    %386 = vector.broadcast %9 : f32 to vector<8x128xf32>
    %387 = arith.cmpf olt, %377, %386 : vector<8x128xf32>
    %388 = arith.andi %385, %387 : vector<8x128xi1>
    %389 = arith.addf %358, %362 : vector<8x128xf32>
    %390 = arith.addf %360, %364 : vector<8x128xf32>
    %391 = arith.mulf %389, %390 : vector<8x128xf32>
    %cst_51 = arith.constant 1.000000e+08 : f32
    %392 = vector.broadcast %cst_51 : f32 to vector<8x128xf32>
    %393 = arith.select %388, %391, %392 : vector<8x128xi1>, vector<8x128xf32>
    %394 = arith.cmpf olt, %393, %328 : vector<8x128xf32>
    %395 = arith.select %394, %393, %328 : vector<8x128xi1>, vector<8x128xf32>
    %396 = arith.select %394, %358, %329 : vector<8x128xi1>, vector<8x128xf32>
    %397 = arith.select %394, %360, %330 : vector<8x128xi1>, vector<8x128xf32>
    %398 = arith.select %394, %362, %331 : vector<8x128xi1>, vector<8x128xf32>
    %399 = arith.select %394, %364, %332 : vector<8x128xi1>, vector<8x128xf32>
    %400 = vector.broadcast %350 : f32 to vector<8x128xf32>
    %401 = arith.select %394, %400, %334 : vector<8x128xi1>, vector<8x128xf32>
    %c35_i32 = arith.constant 35 : i32
    %402 = arith.addi %66, %c35_i32 : i32
    %c0_i32_52 = arith.constant 0 : i32
    %403 = arith.addi %402, %c0_i32_52 : i32
    %404 = arith.index_cast %403 : i32 to index
    %405 = memref.load %arg2[%404] : memref<112xf32, #tpu.memory_space<smem>>
    %c1_i32_53 = arith.constant 1 : i32
    %406 = arith.addi %402, %c1_i32_53 : i32
    %407 = arith.index_cast %406 : i32 to index
    %408 = memref.load %arg2[%407] : memref<112xf32, #tpu.memory_space<smem>>
    %c2_i32_54 = arith.constant 2 : i32
    %409 = arith.addi %402, %c2_i32_54 : i32
    %410 = arith.index_cast %409 : i32 to index
    %411 = memref.load %arg2[%410] : memref<112xf32, #tpu.memory_space<smem>>
    %c3_i32_55 = arith.constant 3 : i32
    %412 = arith.addi %402, %c3_i32_55 : i32
    %413 = arith.index_cast %412 : i32 to index
    %414 = memref.load %arg2[%413] : memref<112xf32, #tpu.memory_space<smem>>
    %c4_i32_56 = arith.constant 4 : i32
    %415 = arith.addi %402, %c4_i32_56 : i32
    %416 = arith.index_cast %415 : i32 to index
    %417 = memref.load %arg2[%416] : memref<112xf32, #tpu.memory_space<smem>>
    %c5_i32_57 = arith.constant 5 : i32
    %418 = arith.addi %402, %c5_i32_57 : i32
    %419 = arith.index_cast %418 : i32 to index
    %420 = memref.load %arg2[%419] : memref<112xf32, #tpu.memory_space<smem>>
    %c6_i32_58 = arith.constant 6 : i32
    %421 = arith.addi %402, %c6_i32_58 : i32
    %422 = arith.index_cast %421 : i32 to index
    %423 = memref.load %arg2[%422] : memref<112xf32, #tpu.memory_space<smem>>
    %424 = vector.broadcast %405 : f32 to vector<8x128xf32>
    %425 = arith.subf %59, %424 : vector<8x128xf32>
    %426 = vector.broadcast %408 : f32 to vector<8x128xf32>
    %427 = arith.subf %63, %426 : vector<8x128xf32>
    %428 = vector.broadcast %411 : f32 to vector<8x128xf32>
    %429 = arith.subf %428, %59 : vector<8x128xf32>
    %430 = vector.broadcast %414 : f32 to vector<8x128xf32>
    %431 = arith.subf %430, %63 : vector<8x128xf32>
    %432 = arith.minimumf %425, %427 : vector<8x128xf32>
    %433 = arith.minimumf %429, %431 : vector<8x128xf32>
    %434 = arith.minimumf %432, %433 : vector<8x128xf32>
    %435 = arith.maximumf %425, %427 : vector<8x128xf32>
    %436 = arith.maximumf %429, %431 : vector<8x128xf32>
    %437 = arith.maximumf %435, %436 : vector<8x128xf32>
    %438 = vector.broadcast %420 : f32 to vector<8x128xf32>
    %439 = arith.subf %59, %438 : vector<8x128xf32>
    %440 = math.absf %439 : vector<8x128xf32>
    %441 = vector.broadcast %423 : f32 to vector<8x128xf32>
    %442 = arith.subf %63, %441 : vector<8x128xf32>
    %443 = math.absf %442 : vector<8x128xf32>
    %444 = arith.maximumf %440, %443 : vector<8x128xf32>
    %cst_59 = arith.constant 0.000000e+00 : f32
    %445 = vector.broadcast %cst_59 : f32 to vector<8x128xf32>
    %446 = arith.cmpf ogt, %434, %445 : vector<8x128xf32>
    %447 = vector.broadcast %12 : f32 to vector<8x128xf32>
    %448 = arith.cmpf ogt, %437, %447 : vector<8x128xf32>
    %449 = arith.andi %446, %448 : vector<8x128xi1>
    %450 = vector.broadcast %15 : f32 to vector<8x128xf32>
    %451 = arith.cmpf ole, %437, %450 : vector<8x128xf32>
    %452 = arith.andi %449, %451 : vector<8x128xi1>
    %453 = vector.broadcast %9 : f32 to vector<8x128xf32>
    %454 = arith.cmpf olt, %444, %453 : vector<8x128xf32>
    %455 = arith.andi %452, %454 : vector<8x128xi1>
    %456 = arith.addf %425, %429 : vector<8x128xf32>
    %457 = arith.addf %427, %431 : vector<8x128xf32>
    %458 = arith.mulf %456, %457 : vector<8x128xf32>
    %cst_60 = arith.constant 1.000000e+08 : f32
    %459 = vector.broadcast %cst_60 : f32 to vector<8x128xf32>
    %460 = arith.select %455, %458, %459 : vector<8x128xi1>, vector<8x128xf32>
    %461 = arith.cmpf olt, %460, %395 : vector<8x128xf32>
    %462 = arith.select %461, %460, %395 : vector<8x128xi1>, vector<8x128xf32>
    %463 = arith.select %461, %425, %396 : vector<8x128xi1>, vector<8x128xf32>
    %464 = arith.select %461, %427, %397 : vector<8x128xi1>, vector<8x128xf32>
    %465 = arith.select %461, %429, %398 : vector<8x128xi1>, vector<8x128xf32>
    %466 = arith.select %461, %431, %399 : vector<8x128xi1>, vector<8x128xf32>
    %467 = vector.broadcast %417 : f32 to vector<8x128xf32>
    %468 = arith.select %461, %467, %401 : vector<8x128xi1>, vector<8x128xf32>
    %c42_i32 = arith.constant 42 : i32
    %469 = arith.addi %66, %c42_i32 : i32
    %c0_i32_61 = arith.constant 0 : i32
    %470 = arith.addi %469, %c0_i32_61 : i32
    %471 = arith.index_cast %470 : i32 to index
    %472 = memref.load %arg2[%471] : memref<112xf32, #tpu.memory_space<smem>>
    %c1_i32_62 = arith.constant 1 : i32
    %473 = arith.addi %469, %c1_i32_62 : i32
    %474 = arith.index_cast %473 : i32 to index
    %475 = memref.load %arg2[%474] : memref<112xf32, #tpu.memory_space<smem>>
    %c2_i32_63 = arith.constant 2 : i32
    %476 = arith.addi %469, %c2_i32_63 : i32
    %477 = arith.index_cast %476 : i32 to index
    %478 = memref.load %arg2[%477] : memref<112xf32, #tpu.memory_space<smem>>
    %c3_i32_64 = arith.constant 3 : i32
    %479 = arith.addi %469, %c3_i32_64 : i32
    %480 = arith.index_cast %479 : i32 to index
    %481 = memref.load %arg2[%480] : memref<112xf32, #tpu.memory_space<smem>>
    %c4_i32_65 = arith.constant 4 : i32
    %482 = arith.addi %469, %c4_i32_65 : i32
    %483 = arith.index_cast %482 : i32 to index
    %484 = memref.load %arg2[%483] : memref<112xf32, #tpu.memory_space<smem>>
    %c5_i32_66 = arith.constant 5 : i32
    %485 = arith.addi %469, %c5_i32_66 : i32
    %486 = arith.index_cast %485 : i32 to index
    %487 = memref.load %arg2[%486] : memref<112xf32, #tpu.memory_space<smem>>
    %c6_i32_67 = arith.constant 6 : i32
    %488 = arith.addi %469, %c6_i32_67 : i32
    %489 = arith.index_cast %488 : i32 to index
    %490 = memref.load %arg2[%489] : memref<112xf32, #tpu.memory_space<smem>>
    %491 = vector.broadcast %472 : f32 to vector<8x128xf32>
    %492 = arith.subf %59, %491 : vector<8x128xf32>
    %493 = vector.broadcast %475 : f32 to vector<8x128xf32>
    %494 = arith.subf %63, %493 : vector<8x128xf32>
    %495 = vector.broadcast %478 : f32 to vector<8x128xf32>
    %496 = arith.subf %495, %59 : vector<8x128xf32>
    %497 = vector.broadcast %481 : f32 to vector<8x128xf32>
    %498 = arith.subf %497, %63 : vector<8x128xf32>
    %499 = arith.minimumf %492, %494 : vector<8x128xf32>
    %500 = arith.minimumf %496, %498 : vector<8x128xf32>
    %501 = arith.minimumf %499, %500 : vector<8x128xf32>
    %502 = arith.maximumf %492, %494 : vector<8x128xf32>
    %503 = arith.maximumf %496, %498 : vector<8x128xf32>
    %504 = arith.maximumf %502, %503 : vector<8x128xf32>
    %505 = vector.broadcast %487 : f32 to vector<8x128xf32>
    %506 = arith.subf %59, %505 : vector<8x128xf32>
    %507 = math.absf %506 : vector<8x128xf32>
    %508 = vector.broadcast %490 : f32 to vector<8x128xf32>
    %509 = arith.subf %63, %508 : vector<8x128xf32>
    %510 = math.absf %509 : vector<8x128xf32>
    %511 = arith.maximumf %507, %510 : vector<8x128xf32>
    %cst_68 = arith.constant 0.000000e+00 : f32
    %512 = vector.broadcast %cst_68 : f32 to vector<8x128xf32>
    %513 = arith.cmpf ogt, %501, %512 : vector<8x128xf32>
    %514 = vector.broadcast %12 : f32 to vector<8x128xf32>
    %515 = arith.cmpf ogt, %504, %514 : vector<8x128xf32>
    %516 = arith.andi %513, %515 : vector<8x128xi1>
    %517 = vector.broadcast %15 : f32 to vector<8x128xf32>
    %518 = arith.cmpf ole, %504, %517 : vector<8x128xf32>
    %519 = arith.andi %516, %518 : vector<8x128xi1>
    %520 = vector.broadcast %9 : f32 to vector<8x128xf32>
    %521 = arith.cmpf olt, %511, %520 : vector<8x128xf32>
    %522 = arith.andi %519, %521 : vector<8x128xi1>
    %523 = arith.addf %492, %496 : vector<8x128xf32>
    %524 = arith.addf %494, %498 : vector<8x128xf32>
    %525 = arith.mulf %523, %524 : vector<8x128xf32>
    %cst_69 = arith.constant 1.000000e+08 : f32
    %526 = vector.broadcast %cst_69 : f32 to vector<8x128xf32>
    %527 = arith.select %522, %525, %526 : vector<8x128xi1>, vector<8x128xf32>
    %528 = arith.cmpf olt, %527, %462 : vector<8x128xf32>
    %529 = arith.select %528, %527, %462 : vector<8x128xi1>, vector<8x128xf32>
    %530 = arith.select %528, %492, %463 : vector<8x128xi1>, vector<8x128xf32>
    %531 = arith.select %528, %494, %464 : vector<8x128xi1>, vector<8x128xf32>
    %532 = arith.select %528, %496, %465 : vector<8x128xi1>, vector<8x128xf32>
    %533 = arith.select %528, %498, %466 : vector<8x128xi1>, vector<8x128xf32>
    %534 = vector.broadcast %484 : f32 to vector<8x128xf32>
    %535 = arith.select %528, %534, %468 : vector<8x128xi1>, vector<8x128xf32>
    %c49_i32 = arith.constant 49 : i32
    %536 = arith.addi %66, %c49_i32 : i32
    %c0_i32_70 = arith.constant 0 : i32
    %537 = arith.addi %536, %c0_i32_70 : i32
    %538 = arith.index_cast %537 : i32 to index
    %539 = memref.load %arg2[%538] : memref<112xf32, #tpu.memory_space<smem>>
    %c1_i32_71 = arith.constant 1 : i32
    %540 = arith.addi %536, %c1_i32_71 : i32
    %541 = arith.index_cast %540 : i32 to index
    %542 = memref.load %arg2[%541] : memref<112xf32, #tpu.memory_space<smem>>
    %c2_i32_72 = arith.constant 2 : i32
    %543 = arith.addi %536, %c2_i32_72 : i32
    %544 = arith.index_cast %543 : i32 to index
    %545 = memref.load %arg2[%544] : memref<112xf32, #tpu.memory_space<smem>>
    %c3_i32_73 = arith.constant 3 : i32
    %546 = arith.addi %536, %c3_i32_73 : i32
    %547 = arith.index_cast %546 : i32 to index
    %548 = memref.load %arg2[%547] : memref<112xf32, #tpu.memory_space<smem>>
    %c4_i32_74 = arith.constant 4 : i32
    %549 = arith.addi %536, %c4_i32_74 : i32
    %550 = arith.index_cast %549 : i32 to index
    %551 = memref.load %arg2[%550] : memref<112xf32, #tpu.memory_space<smem>>
    %c5_i32_75 = arith.constant 5 : i32
    %552 = arith.addi %536, %c5_i32_75 : i32
    %553 = arith.index_cast %552 : i32 to index
    %554 = memref.load %arg2[%553] : memref<112xf32, #tpu.memory_space<smem>>
    %c6_i32_76 = arith.constant 6 : i32
    %555 = arith.addi %536, %c6_i32_76 : i32
    %556 = arith.index_cast %555 : i32 to index
    %557 = memref.load %arg2[%556] : memref<112xf32, #tpu.memory_space<smem>>
    %558 = vector.broadcast %539 : f32 to vector<8x128xf32>
    %559 = arith.subf %59, %558 : vector<8x128xf32>
    %560 = vector.broadcast %542 : f32 to vector<8x128xf32>
    %561 = arith.subf %63, %560 : vector<8x128xf32>
    %562 = vector.broadcast %545 : f32 to vector<8x128xf32>
    %563 = arith.subf %562, %59 : vector<8x128xf32>
    %564 = vector.broadcast %548 : f32 to vector<8x128xf32>
    %565 = arith.subf %564, %63 : vector<8x128xf32>
    %566 = arith.minimumf %559, %561 : vector<8x128xf32>
    %567 = arith.minimumf %563, %565 : vector<8x128xf32>
    %568 = arith.minimumf %566, %567 : vector<8x128xf32>
    %569 = arith.maximumf %559, %561 : vector<8x128xf32>
    %570 = arith.maximumf %563, %565 : vector<8x128xf32>
    %571 = arith.maximumf %569, %570 : vector<8x128xf32>
    %572 = vector.broadcast %554 : f32 to vector<8x128xf32>
    %573 = arith.subf %59, %572 : vector<8x128xf32>
    %574 = math.absf %573 : vector<8x128xf32>
    %575 = vector.broadcast %557 : f32 to vector<8x128xf32>
    %576 = arith.subf %63, %575 : vector<8x128xf32>
    %577 = math.absf %576 : vector<8x128xf32>
    %578 = arith.maximumf %574, %577 : vector<8x128xf32>
    %cst_77 = arith.constant 0.000000e+00 : f32
    %579 = vector.broadcast %cst_77 : f32 to vector<8x128xf32>
    %580 = arith.cmpf ogt, %568, %579 : vector<8x128xf32>
    %581 = vector.broadcast %12 : f32 to vector<8x128xf32>
    %582 = arith.cmpf ogt, %571, %581 : vector<8x128xf32>
    %583 = arith.andi %580, %582 : vector<8x128xi1>
    %584 = vector.broadcast %15 : f32 to vector<8x128xf32>
    %585 = arith.cmpf ole, %571, %584 : vector<8x128xf32>
    %586 = arith.andi %583, %585 : vector<8x128xi1>
    %587 = vector.broadcast %9 : f32 to vector<8x128xf32>
    %588 = arith.cmpf olt, %578, %587 : vector<8x128xf32>
    %589 = arith.andi %586, %588 : vector<8x128xi1>
    %590 = arith.addf %559, %563 : vector<8x128xf32>
    %591 = arith.addf %561, %565 : vector<8x128xf32>
    %592 = arith.mulf %590, %591 : vector<8x128xf32>
    %cst_78 = arith.constant 1.000000e+08 : f32
    %593 = vector.broadcast %cst_78 : f32 to vector<8x128xf32>
    %594 = arith.select %589, %592, %593 : vector<8x128xi1>, vector<8x128xf32>
    %595 = arith.cmpf olt, %594, %529 : vector<8x128xf32>
    %596 = arith.select %595, %594, %529 : vector<8x128xi1>, vector<8x128xf32>
    %597 = arith.select %595, %559, %530 : vector<8x128xi1>, vector<8x128xf32>
    %598 = arith.select %595, %561, %531 : vector<8x128xi1>, vector<8x128xf32>
    %599 = arith.select %595, %563, %532 : vector<8x128xi1>, vector<8x128xf32>
    %600 = arith.select %595, %565, %533 : vector<8x128xi1>, vector<8x128xf32>
    %601 = vector.broadcast %551 : f32 to vector<8x128xf32>
    %602 = arith.select %595, %601, %535 : vector<8x128xi1>, vector<8x128xf32>
    %cst_79 = arith.constant 1.000000e+08 : f32
    %603 = vector.broadcast %cst_79 : f32 to vector<8x128xf32>
    %604 = arith.cmpf olt, %596, %603 : vector<8x128xf32>
    %605 = arith.minimumf %597, %599 : vector<8x128xf32>
    %606 = arith.maximumf %597, %599 : vector<8x128xf32>
    %607 = arith.minimumf %598, %600 : vector<8x128xf32>
    %608 = arith.maximumf %598, %600 : vector<8x128xf32>
    %609 = arith.mulf %605, %607 : vector<8x128xf32>
    %610 = arith.mulf %606, %608 : vector<8x128xf32>
    %cst_80 = arith.constant 1.000000e-10 : f32
    %611 = vector.broadcast %cst_80 : f32 to vector<8x128xf32>
    %612 = arith.addf %610, %611 : vector<8x128xf32>
    %613 = arith.divf %609, %612 : vector<8x128xf32>
    %614 = math.sqrt %613 : vector<8x128xf32>
    %cst_81 = arith.constant -1.000000e+00 : f32
    %615 = vector.broadcast %cst_81 : f32 to vector<8x128xf32>
    %616 = arith.select %604, %597, %615 : vector<8x128xi1>, vector<8x128xf32>
    %c0 = arith.constant 0 : index
    %c0_82 = arith.constant 0 : index
    %c0_83 = arith.constant 0 : index
    %c0_84 = arith.constant 0 : index
    %617 = vector.load %arg4[%c0, %c0_82, %c0_83, %c0_84] : memref<1x6x8x128xf32, #tpu.memory_space<vmem>>, vector<1x1x8x128xf32>
    %618 = vector.shape_cast %617 : vector<1x1x8x128xf32> to vector<8x128xf32>
    %619 = vector.shape_cast %616 : vector<8x128xf32> to vector<1x1x8x128xf32>
    tpu.vector_store %arg4[%c0, %c0_82, %c0_83, %c0_84], %619 {strides = array<i32>} : memref<1x6x8x128xf32, #tpu.memory_space<vmem>>, vector<1x1x8x128xf32>,
    %cst_85 = arith.constant -1.000000e+00 : f32
    %620 = vector.broadcast %cst_85 : f32 to vector<8x128xf32>
    %621 = arith.select %604, %598, %620 : vector<8x128xi1>, vector<8x128xf32>
    %c0_86 = arith.constant 0 : index
    %c1 = arith.constant 1 : index
    %c0_87 = arith.constant 0 : index
    %c0_88 = arith.constant 0 : index
    %622 = vector.load %arg4[%c0_86, %c1, %c0_87, %c0_88] : memref<1x6x8x128xf32, #tpu.memory_space<vmem>>, vector<1x1x8x128xf32>
    %623 = vector.shape_cast %622 : vector<1x1x8x128xf32> to vector<8x128xf32>
    %624 = vector.shape_cast %621 : vector<8x128xf32> to vector<1x1x8x128xf32>
    tpu.vector_store %arg4[%c0_86, %c1, %c0_87, %c0_88], %624 {strides = array<i32>} : memref<1x6x8x128xf32, #tpu.memory_space<vmem>>, vector<1x1x8x128xf32>,
    %cst_89 = arith.constant -1.000000e+00 : f32
    %625 = vector.broadcast %cst_89 : f32 to vector<8x128xf32>
    %626 = arith.select %604, %599, %625 : vector<8x128xi1>, vector<8x128xf32>
    %c0_90 = arith.constant 0 : index
    %c2 = arith.constant 2 : index
    %c0_91 = arith.constant 0 : index
    %c0_92 = arith.constant 0 : index
    %627 = vector.load %arg4[%c0_90, %c2, %c0_91, %c0_92] : memref<1x6x8x128xf32, #tpu.memory_space<vmem>>, vector<1x1x8x128xf32>
    %628 = vector.shape_cast %627 : vector<1x1x8x128xf32> to vector<8x128xf32>
    %629 = vector.shape_cast %626 : vector<8x128xf32> to vector<1x1x8x128xf32>
    tpu.vector_store %arg4[%c0_90, %c2, %c0_91, %c0_92], %629 {strides = array<i32>} : memref<1x6x8x128xf32, #tpu.memory_space<vmem>>, vector<1x1x8x128xf32>,
    %cst_93 = arith.constant -1.000000e+00 : f32
    %630 = vector.broadcast %cst_93 : f32 to vector<8x128xf32>
    %631 = arith.select %604, %600, %630 : vector<8x128xi1>, vector<8x128xf32>
    %c0_94 = arith.constant 0 : index
    %c3 = arith.constant 3 : index
    %c0_95 = arith.constant 0 : index
    %c0_96 = arith.constant 0 : index
    %632 = vector.load %arg4[%c0_94, %c3, %c0_95, %c0_96] : memref<1x6x8x128xf32, #tpu.memory_space<vmem>>, vector<1x1x8x128xf32>
    %633 = vector.shape_cast %632 : vector<1x1x8x128xf32> to vector<8x128xf32>
    %634 = vector.shape_cast %631 : vector<8x128xf32> to vector<1x1x8x128xf32>
    tpu.vector_store %arg4[%c0_94, %c3, %c0_95, %c0_96], %634 {strides = array<i32>} : memref<1x6x8x128xf32, #tpu.memory_space<vmem>>, vector<1x1x8x128xf32>,
    %cst_97 = arith.constant 0.000000e+00 : f32
    %635 = vector.broadcast %cst_97 : f32 to vector<8x128xf32>
    %636 = arith.select %604, %602, %635 : vector<8x128xi1>, vector<8x128xf32>
    %c0_98 = arith.constant 0 : index
    %c4 = arith.constant 4 : index
    %c0_99 = arith.constant 0 : index
    %c0_100 = arith.constant 0 : index
    %637 = vector.load %arg4[%c0_98, %c4, %c0_99, %c0_100] : memref<1x6x8x128xf32, #tpu.memory_space<vmem>>, vector<1x1x8x128xf32>
    %638 = vector.shape_cast %637 : vector<1x1x8x128xf32> to vector<8x128xf32>
    %639 = vector.shape_cast %636 : vector<8x128xf32> to vector<1x1x8x128xf32>
    tpu.vector_store %arg4[%c0_98, %c4, %c0_99, %c0_100], %639 {strides = array<i32>} : memref<1x6x8x128xf32, #tpu.memory_space<vmem>>, vector<1x1x8x128xf32>,
    %cst_101 = arith.constant -1.000000e+00 : f32
    %640 = vector.broadcast %cst_101 : f32 to vector<8x128xf32>
    %641 = arith.select %604, %614, %640 : vector<8x128xi1>, vector<8x128xf32>
    %c0_102 = arith.constant 0 : index
    %c5 = arith.constant 5 : index
    %c0_103 = arith.constant 0 : index
    %c0_104 = arith.constant 0 : index
    %642 = vector.load %arg4[%c0_102, %c5, %c0_103, %c0_104] : memref<1x6x8x128xf32, #tpu.memory_space<vmem>>, vector<1x1x8x128xf32>
    %643 = vector.shape_cast %642 : vector<1x1x8x128xf32> to vector<8x128xf32>
    %644 = vector.shape_cast %641 : vector<8x128xf32> to vector<1x1x8x128xf32>
    tpu.vector_store %arg4[%c0_102, %c5, %c0_103, %c0_104], %644 {strides = array<i32>} : memref<1x6x8x128xf32, #tpu.memory_space<vmem>>, vector<1x1x8x128xf32>,
    return
  }
  func.func @transform_0(%arg0: i32, %arg1: i32) -> i32 {
    %c0_i32 = arith.constant 0 : i32
    %c0_i32_0 = arith.constant 0 : i32
    return %c0_i32 : i32
  }
  func.func @transform_1(%arg0: i32, %arg1: i32) -> i32 {
    %c0_i32 = arith.constant 0 : i32
    %c0_i32_0 = arith.constant 0 : i32
    return %c0_i32 : i32
  }
  func.func @transform_2(%arg0: i32, %arg1: i32) -> (i32, i32, i32, i32) {
    %c0_i32 = arith.constant 0 : i32
    %c0_i32_0 = arith.constant 0 : i32
    %c0_i32_1 = arith.constant 0 : i32
    return %arg0, %c0_i32, %arg1, %c0_i32_0 : i32, i32, i32, i32
  }
}

</mosaic_0001>

<llo_original>
// kernel: tpu_custom_call.1
$region0: #{tpu_custom_call.1}
  #allocation0 [shape = 'u32[]', space=smem, size = 0x4, offset = 0x4, fixed_abs, tag = 'smem constant byte address 0x4 - core index']
  #allocation1 [shape = 'u32[144,128]{1,0:T(1,128)}', space=vmem, size = 0x12000, scoped, tag = 'internal scratch']
  %s0 = inlined_call_operand.hbm [shape: f32[112], index: 0, kind: input, shape index: {}]
  %s1 = inlined_call_operand.vmem [shape: f32[24], index: 1, kind: input, shape index: {}]
  %s2 = inlined_call_operand.hbm [shape: f32[2,6,24,128], index: 2, kind: output, shape index: {}]
  %s3 = sld [smem:[#allocation0]]
  $region49: #{tpu_custom_call.1} parent=0
    _
  %s5 = ssub.s32 1, %s3
  %s6 = scalar_select 0, %s5, %s3
  $region1: #{tpu_custom_call.1} parent=0
    #allocation2 [shape = 'u8[512]{0}', space=smem, size = 0x200, scoped, tag = 'input window, operand 0, single buffered']
    #allocation3 [shape = 's32[2]{0}', space=sflag, size = 0x8, scoped, tag = 'scoped memory for tpu_custom_call.1']
    #allocation4 [shape = 's32[2]{0}', space=sflag, size = 0x8, scoped, tag = 'scoped memory for tpu_custom_call.1']
    #allocation5 [shape = 's32[2]{0}', space=sflag, size = 0x8, scoped, tag = 'scoped memory for tpu_custom_call.1']
    #allocation6 [shape = 'u8[512]{0}', space=smem, size = 0x200, scoped, tag = 'input window, operand 1, single buffered']
    #allocation7 [shape = 'u8[49152]{0}', space=vmem, size = 0xc000, scoped, tag = 'output window, operand 0']
    %7 = vsyncpa [#allocation4], 0
    %8 = vsyncpa [#allocation5], 0
    %9 = vsyncpa [#allocation3], 0
    %s10 = scalar_lea.sflag [#allocation3], 1
    %11 = vsyncpa %s10, 0
    loop: start=0, step=1, limit=8
    $region2: #{tpu_custom_call.1} parent=1 // loop_pre_header
      _
    $region3: #{tpu_custom_call.1} parent=1 // loop_header
      %s13 = sphi 0, %s17
      %p14 = scmp.ge.s32.totalorder %s13, 8
      %s20 = sphi 0, %s32
      %s21 = sphi 0, %s28
      %s22 = sphi 0, %s20
      %s23 = sphi 0, %s21
      %s24 = sphi 0, %s22
      %s25 = sphi 0, %s23
      %s33 = sphi 0, %s33
      %s35 = sphi 0, %s33
      %s36 = sphi 0, %s35
      %s50 = sphi 0, %s36
      %s54 = sphi 0, %s54
      %s56 = sphi 0, %s54
      %s57 = sphi 0, %s56
      %s71 = sphi 0, %s57
      %s79 = sphi 0, %s81
      %s82 = sphi 0, %s79
      %s83 = sphi 0, %s82
      %s99 = sphi 0, %s83
    $region4: #{tpu_custom_call.1} parent=1 // loop_header_branch
      %16 = sbr.rel (%p14) target = $region8
    $region5: #{tpu_custom_call.1} parent=1 // loop_body
      %s18 = ssub.s32 %s13, 1
      %s19 = ssub.s32 %s13, 2
      %s26 = sadd.s32 1, %s21
      %p27 = scmp.ge.s32.totalorder %s26, 3
      %s28 = scalar_select %p27, 0, %s26
      %s29 = sadd.s32 1, %s20
      %s30 = scalar_select %p27, %s29, %s20
      %p31 = scmp.ge.s32.totalorder %s30, 2
      %s32 = scalar_select %p31, 0, %s30
      %s34 = sadd.s32 %s33, 1
      %p37 = scmp.eq.s32.totalorder %s13, 5
      %p38 = scmp.ne.s32.totalorder %s33, %s35
      %p39 = scmp.eq.s32.totalorder %s13, 0
      %p40 = por %p38, %p39
      %p41 = scmp.ne.s32.totalorder %s33, %s35
      %p42 = scmp.eq.s32.totalorder %s18, 5
      %p43 = por %p41, %p42
      %p44 = scmp.ne.s32.totalorder %s35, %s36
      %p45 = scmp.eq.s32.totalorder %s18, 0
      %p46 = por %p44, %p45
      %p47 = scmp.ne.s32.totalorder %s35, %s36
      %p48 = scmp.eq.s32.totalorder %s19, 5
      %p49 = por %p47, %p48
      %p51 = scmp.ne.s32.totalorder %s36, %s50
      %p52 = scmp.eq.s32.totalorder %s19, 0
      %p53 = por %p51, %p52
      %s55 = sadd.s32 %s54, 1
      %p58 = scmp.eq.s32.totalorder %s13, 5
      %p59 = scmp.ne.s32.totalorder %s54, %s56
      %p60 = scmp.eq.s32.totalorder %s13, 0
      %p61 = por %p59, %p60
      %p62 = scmp.ne.s32.totalorder %s54, %s56
      %p63 = scmp.eq.s32.totalorder %s18, 5
      %p64 = por %p62, %p63
      %p65 = scmp.ne.s32.totalorder %s56, %s57
      %p66 = scmp.eq.s32.totalorder %s18, 0
      %p67 = por %p65, %p66
      %p68 = scmp.ne.s32.totalorder %s56, %s57
      %p69 = scmp.eq.s32.totalorder %s19, 5
      %p70 = por %p68, %p69
      %p72 = scmp.ne.s32.totalorder %s57, %s71
      %p73 = scmp.eq.s32.totalorder %s19, 0
      %p74 = por %p72, %p73
      %s75 = ssub.s32 %s20, %s32
      %s76 = ssub.s32 %s21, %s28
      %s77 = sor.u32 %s75, %s76
      %p78 = scmp.eq.s32.totalorder %s77, 0
      %s80 = sadd.s32 %s79, 1
      %s81 = scalar_select %p78, %s79, %s80
      %p84 = pneg %p78
      %p85 = scmp.eq.s32.totalorder %s13, 5
      %p86 = por %p84, %p85
      %p87 = scmp.ne.s32.totalorder %s79, %s82
      %p88 = scmp.eq.s32.totalorder %s13, 0
      %p89 = por %p87, %p88
      %p90 = scmp.ne.s32.totalorder %s79, %s82
      %p91 = scmp.eq.s32.totalorder %s18, 5
      %p92 = por %p90, %p91
      %p93 = scmp.ne.s32.totalorder %s82, %s83
      %p94 = scmp.eq.s32.totalorder %s18, 0
      %p95 = por %p93, %p94
      %p96 = scmp.ne.s32.totalorder %s82, %s83
      %p97 = scmp.eq.s32.totalorder %s19, 5
      %p98 = por %p96, %p97
      %p100 = scmp.ne.s32.totalorder %s83, %s99
      %p101 = scmp.eq.s32.totalorder %s19, 0
      %p102 = por %p100, %p101
      %p103 = scmp.le.s32.totalorder 1, %s13
      %p104 = scmp.lt.s32.totalorder %s13, 7
      %p105 = pnand %p103, %p104
      %p106 = pneg %p105
      // Predicated region
      $region9: #{tpu_custom_call.1} parent=5 // pred_check
        _
      $region10: #{tpu_custom_call.1} parent=5 // pred_check_branch
        %108 = sbr.rel (%p105) target = $region12
      $region11: #{tpu_custom_call.1} parent=5 // pred_region
        %s109 = ssub.s32 %s13, 1
        // Predicated region
        $region13: #{tpu_custom_call.1} parent=11 // pred_check
          %p110 = pneg %p46
        $region14: #{tpu_custom_call.1} parent=11 // pred_check_branch
          %112 = sbr.rel (%p110) target = $region16
        $region15: #{tpu_custom_call.1} parent=11 // pred_region
          %s114 = ssub.s32 16, 16
          %115 = vsyncadd [#allocation4], %s114
          %118 = dma.hbm_to_smem %s0, 16, [#allocation2], [#allocation4]
        $region16: #{tpu_custom_call.1} parent=11 // pred_fallthru
          _
        // Predicated region
        $region17: #{tpu_custom_call.1} parent=11 // pred_check
          %p119 = pneg %p67
        $region18: #{tpu_custom_call.1} parent=11 // pred_check_branch
          %121 = sbr.rel (%p119) target = $region20
        $region19: #{tpu_custom_call.1} parent=11 // pred_region
          %s123 = ssub.s32 16, 16
          %124 = vsyncadd [#allocation5], %s123
          %s126 = sshll.u32 %s1, 4
          %s127 = int_to_ptr.vmem [resolvable:$true] %s126
          %129 = dma.vmem_to_smem %s127, 16, [#allocation6], [#allocation5]
        $region20: #{tpu_custom_call.1} parent=11 // pred_fallthru
          _
      $region12: #{tpu_custom_call.1} parent=5 // pred_fallthru
        _
      %p130 = scmp.lt.s32.totalorder %s13, 6
      // Predicated region
      $region21: #{tpu_custom_call.1} parent=5 // pred_check
        %p131 = pneg %p130
      $region22: #{tpu_custom_call.1} parent=5 // pred_check_branch
        %133 = sbr.rel (%p131) target = $region24
      $region23: #{tpu_custom_call.1} parent=5 // pred_region
        _
      $region24: #{tpu_custom_call.1} parent=5 // pred_fallthru
        _
      %p134 = scmp.le.s32.totalorder 1, %s13
      %p135 = scmp.lt.s32.totalorder %s13, 7
      %p136 = pnand %p134, %p135
      %p137 = pneg %p136
      // Predicated region
      $region25: #{tpu_custom_call.1} parent=5 // pred_check
        _
      $region26: #{tpu_custom_call.1} parent=5 // pred_check_branch
        %139 = sbr.rel (%p136) target = $region28
      $region27: #{tpu_custom_call.1} parent=5 // pred_region
        %s140 = ssub.s32 %s13, 1
        // Predicated region
        $region29: #{tpu_custom_call.1} parent=27 // pred_check
          %p141 = pneg %p46
        $region30: #{tpu_custom_call.1} parent=27 // pred_check_branch
          %143 = sbr.rel (%p141) target = $region32
        $region31: #{tpu_custom_call.1} parent=27 // pred_region
          %144 = dma.done [#allocation4], 16
        $region32: #{tpu_custom_call.1} parent=27 // pred_fallthru
          _
        // Predicated region
        $region33: #{tpu_custom_call.1} parent=27 // pred_check
          %p145 = pneg %p67
        $region34: #{tpu_custom_call.1} parent=27 // pred_check_branch
          %147 = sbr.rel (%p145) target = $region36
        $region35: #{tpu_custom_call.1} parent=27 // pred_region
          %148 = dma.done [#allocation5], 16
        $region36: #{tpu_custom_call.1} parent=27 // pred_fallthru
          _
        %149 = sfence
        %p150 = pneg %p46
        %p151 = pneg %p43
        %p152 = pneg %p67
        %p153 = pneg %p64
        %p154 = pneg %p95
        %p155 = pneg %p92
        %s156 = sand.u32 %s82, 1
        %s157 = scalar_lea.sflag [#allocation3], %s156
        %s158 = sand.u32 %s82, 1
        %s159 = smul.addr %s158, 48
        %s160 = scalar_lea.vmem [#allocation7], %s159
        %s161 = smul.u32 %s23, 8
        %s162 = sld [smem:[#allocation6 + %s161]]
        %s163 = sadd.s32 %s161, 1
        %s164 = sld [smem:[#allocation6 + %s163]]
        %s165 = sadd.s32 %s161, 2
        %s166 = sld [smem:[#allocation6 + %s165]]
        %s167 = sadd.s32 %s161, 3
        %s168 = sld [smem:[#allocation6 + %s167]]
        %s169 = sadd.s32 %s161, 4
        %s170 = sld [smem:[#allocation6 + %s169]]
        %s171 = sadd.s32 %s161, 5
        %s172 = sld [smem:[#allocation6 + %s171]]
        %s173 = sadd.s32 %s161, 6
        %s174 = sld [smem:[#allocation6 + %s173]]
        %s175 = sadd.s32 %s161, 7
        %s176 = sld [smem:[#allocation6 + %s175]]
        %v177 = vlaneseq
        %v178 = vshrl.u32 %v177, 7
        %v179 = vcvt.s32.f32 %v178
        %v180 = vlaneseq
        %v181 = vand.u32 %v180, 127
        %v182 = vcvt.s32.f32 %v181
        %v183 = vmul.f32 %v179, 128.0
        %v184 = vstv %s176
        %v185 = vadd.f32 %v184, %v183
        %v186 = vadd.f32 %v185, %v182
        %v187 = vstv %s172
        %v188 = vmul.f32 %v186, %v187
        %v189 = vfloor.f32 %v188
        %v190 = vstv %s174
        %v191 = vmul.f32 %v189, %v190
        %v192 = vsub.f32 %v186, %v191
        %vm193 = vcmp.lt.f32.partialorder %v192, 0.0
        %v194 = vsub.f32 %v189, 1.0
        %v195 = vsel %vm193, %v194, %v189
        %v196 = vadd.f32 %v192, %v190
        %v197 = vsel %vm193, %v196, %v192
        %vm198 = vcmp.ge.f32.partialorder %v197, %v190
        %v199 = vadd.f32 %v195, 1.0
        %v200 = vsel %vm198, %v199, %v195
        %v201 = vsub.f32 %v197, %v190
        %v202 = vsel %vm198, %v201, %v197
        %v203 = vstv %s162
        %v204 = vmul.f32 %v202, %v203
        %v205 = vstv %s164
        %v206 = vadd.f32 %v204, %v205
        %v207 = vmul.f32 %v200, %v203
        %v208 = vadd.f32 %v207, %v205
        %s209 = smul.u32 %s22, 56
        %s210 = sld [smem:[#allocation2 + %s209]]
        %s211 = sadd.s32 %s209, 1
        %s212 = sld [smem:[#allocation2 + %s211]]
        %s213 = sadd.s32 %s209, 2
        %s214 = sld [smem:[#allocation2 + %s213]]
        %s215 = sadd.s32 %s209, 3
        %s216 = sld [smem:[#allocation2 + %s215]]
        %s217 = sadd.s32 %s209, 4
        %s218 = sld [smem:[#allocation2 + %s217]]
        %s219 = sadd.s32 %s209, 5
        %s220 = sld [smem:[#allocation2 + %s219]]
        %s221 = sadd.s32 %s209, 6
        %s222 = sld [smem:[#allocation2 + %s221]]
        %v223 = vstv %s210
        %v224 = vsub.f32 %v206, %v223
        %v225 = vstv %s212
        %v226 = vsub.f32 %v208, %v225
        %v227 = vstv %s214
        %v228 = vsub.f32 %v227, %v206
        %v229 = vstv %s216
        %v230 = vsub.f32 %v229, %v208
        %v231 = vmin.f32 %v224, %v226
        %v232 = vmin.f32 %v228, %v230
        %v233 = vmin.f32 %v231, %v232
        %v234 = vmax.f32 %v224, %v226
        %v235 = vmax.f32 %v228, %v230
        %v236 = vmax.f32 %v234, %v235
        %v237 = vstv %s220
        %v238 = vsub.f32 %v206, %v237
        %v239 = vand.u32 2147483647, %v238
        %v240 = vstv %s222
        %v241 = vsub.f32 %v208, %v240
        %v242 = vand.u32 2147483647, %v241
        %v243 = vmax.f32 %v239, %v242
        %vm244 = vcmp.gt.f32.partialorder %v233, 0.0
        %v245 = vstv %s168
        %vm246 = vcmp.gt.f32.partialorder %v236, %v245
        %vm247 = vmand %vm244, %vm246
        %v248 = vstv %s170
        %vm249 = vcmp.le.f32.partialorder %v236, %v248
        %vm250 = vmand %vm247, %vm249
        %v251 = vstv %s166
        %vm252 = vcmp.lt.f32.partialorder %v243, %v251
        %vm253 = vmand %vm250, %vm252
        %v254 = vadd.f32 %v224, %v228
        %v255 = vadd.f32 %v226, %v230
        %v256 = vmul.f32 %v254, %v255
        %v257 = vsel %vm253, %v256, 1e+08
        %vm258 = vcmp.lt.f32.partialorder %v257, 1e+08
        %v259 = vsel %vm258, %v257, 1e+08
        %v260 = vsel %vm258, %v224, 0.0
        %v261 = vsel %vm258, %v226, 0.0
        %v262 = vsel %vm258, %v228, 0.0
        %v263 = vsel %vm258, %v230, 0.0
        %v264 = vstv %s218
        %v265 = vsel %vm258, %v264, 0.0
        %s266 = sadd.s32 %s209, 7
        %s267 = sld [smem:[#allocation2 + %s266]]
        %s268 = sadd.s32 %s209, 8
        %s269 = sld [smem:[#allocation2 + %s268]]
        %s270 = sadd.s32 %s209, 9
        %s271 = sld [smem:[#allocation2 + %s270]]
        %s272 = sadd.s32 %s209, 10
        %s273 = sld [smem:[#allocation2 + %s272]]
        %s274 = sadd.s32 %s209, 11
        %s275 = sld [smem:[#allocation2 + %s274]]
        %s276 = sadd.s32 %s209, 12
        %s277 = sld [smem:[#allocation2 + %s276]]
        %s278 = sadd.s32 %s209, 13
        %s279 = sld [smem:[#allocation2 + %s278]]
        %v280 = vstv %s267
        %v281 = vsub.f32 %v206, %v280
        %v282 = vstv %s269
        %v283 = vsub.f32 %v208, %v282
        %v284 = vstv %s271
        %v285 = vsub.f32 %v284, %v206
        %v286 = vstv %s273
        %v287 = vsub.f32 %v286, %v208
        %v288 = vmin.f32 %v281, %v283
        %v289 = vmin.f32 %v285, %v287
        %v290 = vmin.f32 %v288, %v289
        %v291 = vmax.f32 %v281, %v283
        %v292 = vmax.f32 %v285, %v287
        %v293 = vmax.f32 %v291, %v292
        %v294 = vstv %s277
        %v295 = vsub.f32 %v206, %v294
        %v296 = vand.u32 2147483647, %v295
        %v297 = vstv %s279
        %v298 = vsub.f32 %v208, %v297
        %v299 = vand.u32 2147483647, %v298
        %v300 = vmax.f32 %v296, %v299
        %vm301 = vcmp.gt.f32.partialorder %v290, 0.0
        %vm302 = vcmp.gt.f32.partialorder %v293, %v245
        %vm303 = vmand %vm301, %vm302
        %vm304 = vcmp.le.f32.partialorder %v293, %v248
        %vm305 = vmand %vm303, %vm304
        %vm306 = vcmp.lt.f32.partialorder %v300, %v251
        %vm307 = vmand %vm305, %vm306
        %v308 = vadd.f32 %v281, %v285
        %v309 = vadd.f32 %v283, %v287
        %v310 = vmul.f32 %v308, %v309
        %v311 = vsel %vm307, %v310, 1e+08
        %vm312 = vcmp.lt.f32.partialorder %v311, %v259
        %v313 = vsel %vm312, %v311, %v259
        %v314 = vsel %vm312, %v281, %v260
        %v315 = vsel %vm312, %v283, %v261
        %v316 = vsel %vm312, %v285, %v262
        %v317 = vsel %vm312, %v287, %v263
        %v318 = vstv %s275
        %v319 = vsel %vm312, %v318, %v265
        %s320 = sadd.s32 %s209, 14
        %s321 = sld [smem:[#allocation2 + %s320]]
        %s322 = sadd.s32 %s209, 15
        %s323 = sld [smem:[#allocation2 + %s322]]
        %s324 = sadd.s32 %s209, 16
        %s325 = sld [smem:[#allocation2 + %s324]]
        %s326 = sadd.s32 %s209, 17
        %s327 = sld [smem:[#allocation2 + %s326]]
        %s328 = sadd.s32 %s209, 18
        %s329 = sld [smem:[#allocation2 + %s328]]
        %s330 = sadd.s32 %s209, 19
        %s331 = sld [smem:[#allocation2 + %s330]]
        %s332 = sadd.s32 %s209, 20
        %s333 = sld [smem:[#allocation2 + %s332]]
        %v334 = vstv %s321
        %v335 = vsub.f32 %v206, %v334
        %v336 = vstv %s323
        %v337 = vsub.f32 %v208, %v336
        %v338 = vstv %s325
        %v339 = vsub.f32 %v338, %v206
        %v340 = vstv %s327
        %v341 = vsub.f32 %v340, %v208
        %v342 = vmin.f32 %v335, %v337
        %v343 = vmin.f32 %v339, %v341
        %v344 = vmin.f32 %v342, %v343
        %v345 = vmax.f32 %v335, %v337
        %v346 = vmax.f32 %v339, %v341
        %v347 = vmax.f32 %v345, %v346
        %v348 = vstv %s331
        %v349 = vsub.f32 %v206, %v348
        %v350 = vand.u32 2147483647, %v349
        %v351 = vstv %s333
        %v352 = vsub.f32 %v208, %v351
        %v353 = vand.u32 2147483647, %v352
        %v354 = vmax.f32 %v350, %v353
        %vm355 = vcmp.gt.f32.partialorder %v344, 0.0
        %vm356 = vcmp.gt.f32.partialorder %v347, %v245
        %vm357 = vmand %vm355, %vm356
        %vm358 = vcmp.le.f32.partialorder %v347, %v248
        %vm359 = vmand %vm357, %vm358
        %vm360 = vcmp.lt.f32.partialorder %v354, %v251
        %vm361 = vmand %vm359, %vm360
        %v362 = vadd.f32 %v335, %v339
        %v363 = vadd.f32 %v337, %v341
        %v364 = vmul.f32 %v362, %v363
        %v365 = vsel %vm361, %v364, 1e+08
        %vm366 = vcmp.lt.f32.partialorder %v365, %v313
        %v367 = vsel %vm366, %v365, %v313
        %v368 = vsel %vm366, %v335, %v314
        %v369 = vsel %vm366, %v337, %v315
        %v370 = vsel %vm366, %v339, %v316
        %v371 = vsel %vm366, %v341, %v317
        %v372 = vstv %s329
        %v373 = vsel %vm366, %v372, %v319
        %s374 = sadd.s32 %s209, 21
        %s375 = sld [smem:[#allocation2 + %s374]]
        %s376 = sadd.s32 %s209, 22
        %s377 = sld [smem:[#allocation2 + %s376]]
        %s378 = sadd.s32 %s209, 23
        %s379 = sld [smem:[#allocation2 + %s378]]
        %s380 = sadd.s32 %s209, 24
        %s381 = sld [smem:[#allocation2 + %s380]]
        %s382 = sadd.s32 %s209, 25
        %s383 = sld [smem:[#allocation2 + %s382]]
        %s384 = sadd.s32 %s209, 26
        %s385 = sld [smem:[#allocation2 + %s384]]
        %s386 = sadd.s32 %s209, 27
        %s387 = sld [smem:[#allocation2 + %s386]]
        %v388 = vstv %s375
        %v389 = vsub.f32 %v206, %v388
        %v390 = vstv %s377
        %v391 = vsub.f32 %v208, %v390
        %v392 = vstv %s379
        %v393 = vsub.f32 %v392, %v206
        %v394 = vstv %s381
        %v395 = vsub.f32 %v394, %v208
        %v396 = vmin.f32 %v389, %v391
        %v397 = vmin.f32 %v393, %v395
        %v398 = vmin.f32 %v396, %v397
        %v399 = vmax.f32 %v389, %v391
        %v400 = vmax.f32 %v393, %v395
        %v401 = vmax.f32 %v399, %v400
        %v402 = vstv %s385
        %v403 = vsub.f32 %v206, %v402
        %v404 = vand.u32 2147483647, %v403
        %v405 = vstv %s387
        %v406 = vsub.f32 %v208, %v405
        %v407 = vand.u32 2147483647, %v406
        %v408 = vmax.f32 %v404, %v407
        %vm409 = vcmp.gt.f32.partialorder %v398, 0.0
        %vm410 = vcmp.gt.f32.partialorder %v401, %v245
        %vm411 = vmand %vm409, %vm410
        %vm412 = vcmp.le.f32.partialorder %v401, %v248
        %vm413 = vmand %vm411, %vm412
        %vm414 = vcmp.lt.f32.partialorder %v408, %v251
        %vm415 = vmand %vm413, %vm414
        %v416 = vadd.f32 %v389, %v393
        %v417 = vadd.f32 %v391, %v395
        %v418 = vmul.f32 %v416, %v417
        %v419 = vsel %vm415, %v418, 1e+08
        %vm420 = vcmp.lt.f32.partialorder %v419, %v367
        %v421 = vsel %vm420, %v419, %v367
        %v422 = vsel %vm420, %v389, %v368
        %v423 = vsel %vm420, %v391, %v369
        %v424 = vsel %vm420, %v393, %v370
        %v425 = vsel %vm420, %v395, %v371
        %v426 = vstv %s383
        %v427 = vsel %vm420, %v426, %v373
        %s428 = sadd.s32 %s209, 28
        %s429 = sld [smem:[#allocation2 + %s428]]
        %s430 = sadd.s32 %s209, 29
        %s431 = sld [smem:[#allocation2 + %s430]]
        %s432 = sadd.s32 %s209, 30
        %s433 = sld [smem:[#allocation2 + %s432]]
        %s434 = sadd.s32 %s209, 31
        %s435 = sld [smem:[#allocation2 + %s434]]
        %s436 = sadd.s32 %s209, 32
        %s437 = sld [smem:[#allocation2 + %s436]]
        %s438 = sadd.s32 %s209, 33
        %s439 = sld [smem:[#allocation2 + %s438]]
        %s440 = sadd.s32 %s209, 34
        %s441 = sld [smem:[#allocation2 + %s440]]
        %v442 = vstv %s429
        %v443 = vsub.f32 %v206, %v442
        %v444 = vstv %s431
        %v445 = vsub.f32 %v208, %v444
        %v446 = vstv %s433
        %v447 = vsub.f32 %v446, %v206
        %v448 = vstv %s435
        %v449 = vsub.f32 %v448, %v208
        %v450 = vmin.f32 %v443, %v445
        %v451 = vmin.f32 %v447, %v449
        %v452 = vmin.f32 %v450, %v451
        %v453 = vmax.f32 %v443, %v445
        %v454 = vmax.f32 %v447, %v449
        %v455 = vmax.f32 %v453, %v454
        %v456 = vstv %s439
        %v457 = vsub.f32 %v206, %v456
        %v458 = vand.u32 2147483647, %v457
        %v459 = vstv %s441
        %v460 = vsub.f32 %v208, %v459
        %v461 = vand.u32 2147483647, %v460
        %v462 = vmax.f32 %v458, %v461
        %vm463 = vcmp.gt.f32.partialorder %v452, 0.0
        %vm464 = vcmp.gt.f32.partialorder %v455, %v245
        %vm465 = vmand %vm463, %vm464
        %vm466 = vcmp.le.f32.partialorder %v455, %v248
        %vm467 = vmand %vm465, %vm466
        %vm468 = vcmp.lt.f32.partialorder %v462, %v251
        %vm469 = vmand %vm467, %vm468
        %v470 = vadd.f32 %v443, %v447
        %v471 = vadd.f32 %v445, %v449
        %v472 = vmul.f32 %v470, %v471
        %v473 = vsel %vm469, %v472, 1e+08
        %vm474 = vcmp.lt.f32.partialorder %v473, %v421
        %v475 = vsel %vm474, %v473, %v421
        %v476 = vsel %vm474, %v443, %v422
        %v477 = vsel %vm474, %v445, %v423
        %v478 = vsel %vm474, %v447, %v424
        %v479 = vsel %vm474, %v449, %v425
        %v480 = vstv %s437
        %v481 = vsel %vm474, %v480, %v427
        %s482 = sadd.s32 %s209, 35
        %s483 = sld [smem:[#allocation2 + %s482]]
        %s484 = sadd.s32 %s209, 36
        %s485 = sld [smem:[#allocation2 + %s484]]
        %s486 = sadd.s32 %s209, 37
        %s487 = sld [smem:[#allocation2 + %s486]]
        %s488 = sadd.s32 %s209, 38
        %s489 = sld [smem:[#allocation2 + %s488]]
        %s490 = sadd.s32 %s209, 39
        %s491 = sld [smem:[#allocation2 + %s490]]
        %s492 = sadd.s32 %s209, 40
        %s493 = sld [smem:[#allocation2 + %s492]]
        %s494 = sadd.s32 %s209, 41
        %s495 = sld [smem:[#allocation2 + %s494]]
        %v496 = vstv %s483
        %v497 = vsub.f32 %v206, %v496
        %v498 = vstv %s485
        %v499 = vsub.f32 %v208, %v498
        %v500 = vstv %s487
        %v501 = vsub.f32 %v500, %v206
        %v502 = vstv %s489
        %v503 = vsub.f32 %v502, %v208
        %v504 = vmin.f32 %v497, %v499
        %v505 = vmin.f32 %v501, %v503
        %v506 = vmin.f32 %v504, %v505
        %v507 = vmax.f32 %v497, %v499
        %v508 = vmax.f32 %v501, %v503
        %v509 = vmax.f32 %v507, %v508
        %v510 = vstv %s493
        %v511 = vsub.f32 %v206, %v510
        %v512 = vand.u32 2147483647, %v511
        %v513 = vstv %s495
        %v514 = vsub.f32 %v208, %v513
        %v515 = vand.u32 2147483647, %v514
        %v516 = vmax.f32 %v512, %v515
        %vm517 = vcmp.gt.f32.partialorder %v506, 0.0
        %vm518 = vcmp.gt.f32.partialorder %v509, %v245
        %vm519 = vmand %vm517, %vm518
        %vm520 = vcmp.le.f32.partialorder %v509, %v248
        %vm521 = vmand %vm519, %vm520
        %vm522 = vcmp.lt.f32.partialorder %v516, %v251
        %vm523 = vmand %vm521, %vm522
        %v524 = vadd.f32 %v497, %v501
        %v525 = vadd.f32 %v499, %v503
        %v526 = vmul.f32 %v524, %v525
        %v527 = vsel %vm523, %v526, 1e+08
        %vm528 = vcmp.lt.f32.partialorder %v527, %v475
        %v529 = vsel %vm528, %v527, %v475
        %v530 = vsel %vm528, %v497, %v476
        %v531 = vsel %vm528, %v499, %v477
        %v532 = vsel %vm528, %v501, %v478
        %v533 = vsel %vm528, %v503, %v479
        %v534 = vstv %s491
        %v535 = vsel %vm528, %v534, %v481
        %s536 = sadd.s32 %s209, 42
        %s537 = sld [smem:[#allocation2 + %s536]]
        %s538 = sadd.s32 %s209, 43
        %s539 = sld [smem:[#allocation2 + %s538]]
        %s540 = sadd.s32 %s209, 44
        %s541 = sld [smem:[#allocation2 + %s540]]
        %s542 = sadd.s32 %s209, 45
        %s543 = sld [smem:[#allocation2 + %s542]]
        %s544 = sadd.s32 %s209, 46
        %s545 = sld [smem:[#allocation2 + %s544]]
        %s546 = sadd.s32 %s209, 47
        %s547 = sld [smem:[#allocation2 + %s546]]
        %s548 = sadd.s32 %s209, 48
        %s549 = sld [smem:[#allocation2 + %s548]]
        %v550 = vstv %s537
        %v551 = vsub.f32 %v206, %v550
        %v552 = vstv %s539
        %v553 = vsub.f32 %v208, %v552
        %v554 = vstv %s541
        %v555 = vsub.f32 %v554, %v206
        %v556 = vstv %s543
        %v557 = vsub.f32 %v556, %v208
        %v558 = vmin.f32 %v551, %v553
        %v559 = vmin.f32 %v555, %v557
        %v560 = vmin.f32 %v558, %v559
        %v561 = vmax.f32 %v551, %v553
        %v562 = vmax.f32 %v555, %v557
        %v563 = vmax.f32 %v561, %v562
        %v564 = vstv %s547
        %v565 = vsub.f32 %v206, %v564
        %v566 = vand.u32 2147483647, %v565
        %v567 = vstv %s549
        %v568 = vsub.f32 %v208, %v567
        %v569 = vand.u32 2147483647, %v568
        %v570 = vmax.f32 %v566, %v569
        %vm571 = vcmp.gt.f32.partialorder %v560, 0.0
        %vm572 = vcmp.gt.f32.partialorder %v563, %v245
        %vm573 = vmand %vm571, %vm572
        %vm574 = vcmp.le.f32.partialorder %v563, %v248
        %vm575 = vmand %vm573, %vm574
        %vm576 = vcmp.lt.f32.partialorder %v570, %v251
        %vm577 = vmand %vm575, %vm576
        %v578 = vadd.f32 %v551, %v555
        %v579 = vadd.f32 %v553, %v557
        %v580 = vmul.f32 %v578, %v579
        %v581 = vsel %vm577, %v580, 1e+08
        %vm582 = vcmp.lt.f32.partialorder %v581, %v529
        %v583 = vsel %vm582, %v581, %v529
        %v584 = vsel %vm582, %v551, %v530
        %v585 = vsel %vm582, %v553, %v531
        %v586 = vsel %vm582, %v555, %v532
        %v587 = vsel %vm582, %v557, %v533
        %v588 = vstv %s545
        %v589 = vsel %vm582, %v588, %v535
        %s590 = sadd.s32 %s209, 49
        %s591 = sld [smem:[#allocation2 + %s590]]
        %s592 = sadd.s32 %s209, 50
        %s593 = sld [smem:[#allocation2 + %s592]]
        %s594 = sadd.s32 %s209, 51
        %s595 = sld [smem:[#allocation2 + %s594]]
        %s596 = sadd.s32 %s209, 52
        %s597 = sld [smem:[#allocation2 + %s596]]
        %s598 = sadd.s32 %s209, 53
        %s599 = sld [smem:[#allocation2 + %s598]]
        %s600 = sadd.s32 %s209, 54
        %s601 = sld [smem:[#allocation2 + %s600]]
        %s602 = sadd.s32 %s209, 55
        %s603 = sld [smem:[#allocation2 + %s602]]
        %v604 = vstv %s591
        %v605 = vsub.f32 %v206, %v604
        %v606 = vstv %s593
        %v607 = vsub.f32 %v208, %v606
        %v608 = vstv %s595
        %v609 = vsub.f32 %v608, %v206
        %v610 = vstv %s597
        %v611 = vsub.f32 %v610, %v208
        %v612 = vmin.f32 %v605, %v607
        %v613 = vmin.f32 %v609, %v611
        %v614 = vmin.f32 %v612, %v613
        %v615 = vmax.f32 %v605, %v607
        %v616 = vmax.f32 %v609, %v611
        %v617 = vmax.f32 %v615, %v616
        %v618 = vstv %s601
        %v619 = vsub.f32 %v206, %v618
        %v620 = vand.u32 2147483647, %v619
        %v621 = vstv %s603
        %v622 = vsub.f32 %v208, %v621
        %v623 = vand.u32 2147483647, %v622
        %v624 = vmax.f32 %v620, %v623
        %vm625 = vcmp.gt.f32.partialorder %v614, 0.0
        %vm626 = vcmp.gt.f32.partialorder %v617, %v245
        %vm627 = vmand %vm625, %vm626
        %vm628 = vcmp.le.f32.partialorder %v617, %v248
        %vm629 = vmand %vm627, %vm628
        %vm630 = vcmp.lt.f32.partialorder %v624, %v251
        %vm631 = vmand %vm629, %vm630
        %v632 = vadd.f32 %v605, %v609
        %v633 = vadd.f32 %v607, %v611
        %v634 = vmul.f32 %v632, %v633
        %v635 = vsel %vm631, %v634, 1e+08
        %vm636 = vcmp.lt.f32.partialorder %v635, %v583
        %v637 = vsel %vm636, %v635, %v583
        %v638 = vsel %vm636, %v605, %v584
        %v639 = vsel %vm636, %v607, %v585
        %v640 = vsel %vm636, %v609, %v586
        %v641 = vsel %vm636, %v611, %v587
        %v642 = vstv %s599
        %v643 = vsel %vm636, %v642, %v589
        %vm644 = vcmp.lt.f32.partialorder %v637, 1e+08
        %v645 = vmin.f32 %v638, %v640
        %v646 = vmax.f32 %v638, %v640
        %v647 = vmin.f32 %v639, %v641
        %v648 = vmax.f32 %v639, %v641
        %v649 = vmul.f32 %v645, %v647
        %v650 = vmul.f32 %v646, %v648
        %v651 = vadd.f32 %v650, 1e-10
        %v652 = vrcp.pop %v651
        %v653 = vmul.f32 %v649, %v652
        %v654 = vrsqrt.pop %v653
        %v655 = vmul.f32 %v653, %v654
        %vm656 = vcmp.eq.f32.partialorder %v653, inf
        %v657 = vsel %vm656, %v653, %v655
        %vm658 = vcmp.eq.f32.partialorder %v653, 0.0
        %v659 = vand.u32 %v653, 2147483648
        %v660 = vsel %vm658, %v659, %v657
        %v661 = vsel %vm644, %v638, -1.0
        %662 = vst [vmem:[%s160] sm:$0xff] %v661
        %v663 = vsel %vm644, %v639, -1.0
        %s664 = scalar_lea.vmem %s160, 8 [#allocation7]
        %665 = vst [vmem:[%s664] sm:$0xff] %v663
        %v666 = vsel %vm644, %v640, -1.0
        %s667 = scalar_lea.vmem %s160, 16 [#allocation7]
        %668 = vst [vmem:[%s667] sm:$0xff] %v666
        %v669 = vsel %vm644, %v641, -1.0
        %s670 = scalar_lea.vmem %s160, 24 [#allocation7]
        %671 = vst [vmem:[%s670] sm:$0xff] %v669
        %v672 = vsel %vm644, %v643, 0.0
        %s673 = scalar_lea.vmem %s160, 32 [#allocation7]
        %674 = vst [vmem:[%s673] sm:$0xff] %v672
        %v675 = vsel %vm644, %v660, -1.0
        %s676 = scalar_lea.vmem %s160, 40 [#allocation7]
        %677 = vst [vmem:[%s676] sm:$0xff] %v675
        %s678 = sand.u32 %s82, 1
        %s679 = scalar_lea.sflag [#allocation3], %s678
        %s680 = sand.u32 %s82, 1
        %s681 = smul.addr %s680, 48
        %s682 = scalar_lea.vmem [#allocation7], %s681
        // Predicated region
        $region37: #{tpu_custom_call.1} parent=27 // pred_check
          %p683 = pneg %p92
        $region38: #{tpu_custom_call.1} parent=27 // pred_check_branch
          %685 = sbr.rel (%p683) target = $region40
        $region39: #{tpu_custom_call.1} parent=27 // pred_region
          %s687 = ssub.s32 768, 768
          %688 = vsyncadd %s679, %s687
          %s689 = smul.addr %s22, 18
          %s690 = sadd.s32 %s23, %s689
          %s691 = smul.addr %s690, 128
          %s692 = scalar_lea.hbm %s2, %s691
          %s693 = sshll.u32 %s682, 4
          %s694 = int_to_ptr.vmem [resolvable:$true] %s693
          %699 = dma.vmem_to_hbm [thread:$0]  %s694, 768, %s692, %s679, 128, 384, 8
        $region40: #{tpu_custom_call.1} parent=27 // pred_fallthru
          _
      $region28: #{tpu_custom_call.1} parent=5 // pred_fallthru
        _
      %p700 = scmp.le.s32.totalorder 2, %s13
      // Predicated region
      $region41: #{tpu_custom_call.1} parent=5 // pred_check
        %p701 = pneg %p700
      $region42: #{tpu_custom_call.1} parent=5 // pred_check_branch
        %703 = sbr.rel (%p701) target = $region44
      $region43: #{tpu_custom_call.1} parent=5 // pred_region
        %s704 = ssub.s32 %s13, 2
        // Predicated region
        $region45: #{tpu_custom_call.1} parent=43 // pred_check
          %p705 = pneg %p98
        $region46: #{tpu_custom_call.1} parent=43 // pred_check_branch
          %707 = sbr.rel (%p705) target = $region48
        $region47: #{tpu_custom_call.1} parent=43 // pred_region
          %s708 = sand.u32 %s83, 1
          %s709 = scalar_lea.sflag [#allocation3], %s708
          %s710 = sand.u32 %s83, 1
          %s711 = smul.addr %s710, 48
          %s712 = scalar_lea.vmem [#allocation7], %s711
          %713 = dma.done %s709, 768
        $region48: #{tpu_custom_call.1} parent=43 // pred_fallthru
          _
      $region44: #{tpu_custom_call.1} parent=5 // pred_fallthru
        _
    $region6: #{tpu_custom_call.1} parent=1 // loop_footer
      %s17 = sadd.s32 1, %s13
    $region7: #{tpu_custom_call.1} parent=1 // loop_footer_branch
      %12 = sbr.rel target = $region3
    $region8: #{tpu_custom_call.1} parent=1 // loop_exit
      _
    %714 = vsyncpa [#allocation3], 1
    %s715 = scalar_lea.sflag [#allocation3], 1
    %716 = vsyncpa %s715, 1
    %717 = vsyncpa [#allocation4], 1
    %s718 = scalar_lea.sflag [#allocation4], 1
    %719 = vsyncpa %s718, 1
    %720 = vsyncpa [#allocation5], 1
    %s721 = scalar_lea.sflag [#allocation5], 1
    %722 = vsyncpa %s721, 1

</llo_original>
